<compile_context>
chip_gen: v7x
topology: tpu7x:2x2x1
jax: 0.10.0
libtpu: 0.0.40
codegen_flags: <defaults>
</compile_context>

<pallas_src>
import jax
import jax.numpy as jnp
from jax.experimental import pallas as pl
from jax.experimental.pallas import tpu as pltpu

NEG_SLOPE = 0.2


def _lrelu(x):
    return jnp.where(x >= 0, x, NEG_SLOPE * x)


# ----------------------------- fused Pallas kernel ------------------------- #

def up_projection_kernel(x_ref, t1_ref, b1_ref, t2_ref, b2_ref, t3_ref, b3_ref,
                         o_ref, sg_ref, sd_ref):
    """One image-block per grid step.

    x_ref : (1, Rb, 3*W*C)   pre-padded + kh-stacked input rows (bf16)
    tN_ref: (3*W*Cin, W*Cout) kh-stacked banded-Toeplitz weights (bf16)
    bN_ref: (1, W*Cout)       f32 bias rows (lane index = w*Cout + co)
    o_ref : (ipb, H, W*4C)    lane-dense output rows (pre-PixelShuffle)
    sg/sd : kh-stacked VMEM scratch for the intermediates g and d.
    Row convention: row m of every slab corresponds to padded row m; lane block j
    of a stacked slab holds the activation at padded row m + j - 1 (the kh=j tap).
    """
    ipb, H, _ = o_ref.shape
    Rb = x_ref.shape[1]                       # = ipb * (H + 2)
    WC = x_ref.shape[2] // 3                  # lanes per un-stacked activation row
    f32 = jnp.float32

    xs = x_ref[0]                             # (Rb, 3*WC) bf16
    x_ctr = xs[:, WC:2 * WC].astype(f32)      # x at padded row m (center tap)

    def conv(lhs, t_ref, b_ref):
        acc = jnp.dot(lhs, t_ref[...], preferred_element_type=f32)   # 1 MXU push
        return _lrelu(acc + b_ref[...])                              # bias in epilogue

    def zero_guards(s_ref):
        # Re-zero only the guard rows (per-image H padding) of the stacked slab,
        # every step, BEFORE the value stores below overwrite the interior rows.
        # Megacore-safe (no reliance on a program_id == 0 first-step init) and
        # touches only 4*ipb rows instead of the whole slab.
        z2 = jnp.zeros((2, s_ref.shape[1]), s_ref.dtype)
        s_ref[0:2, :] = z2
        s_ref[Rb - 2:Rb, :] = z2
        for i in range(1, ipb):               # inner image boundaries
            b = i * (H + 2)
            s_ref[b - 2:b + 2, :] = jnp.zeros((4, s_ref.shape[1]), s_ref.dtype)

    def scatter_stacked(s_ref, val):
        # val[m] = activation at padded row m.  Write each image's H interior rows
        # into the three kh-shifted lane blocks so the next conv is one matmul.
        K = val.shape[1]
        for i in range(ipb):
            b = i * (H + 2)
            v = val[b + 1:b + H + 1].astype(s_ref.dtype)
            s_ref[b + 2:b + H + 2, 0:K] = v           # kh = 0 tap sees row m - 1
            s_ref[b + 1:b + H + 1, K:2 * K] = v       # kh = 1 (center tap)
            s_ref[b:b + H, 2 * K:3 * K] = v           # kh = 2 tap sees row m + 1

    # conv1 (PSBlock 1, pre-shuffle): 4 -> 16 channels.
    g = conv(xs, t1_ref, b1_ref)                      # (Rb, W*4C) f32
    zero_guards(sg_ref)
    scatter_stacked(sg_ref, g)

    # conv2 (the 6x6/stride-2 up_conv2, re-indexed onto pre-shuffle g): 16 -> 4.
    d = conv(sg_ref[...], t2_ref, b2_ref) - x_ctr     # (Rb, W*C) f32   (= l0r - x)
    zero_guards(sd_ref)
    scatter_stacked(sd_ref, d)

    # conv3 (PSBlock 2) + h0 residual (still pre-shuffle): 4 -> 16.
    s = conv(sd_ref[...], t3_ref, b3_ref) + g         # (Rb, W*4C) f32

    for i in range(ipb):
        b = i * (H + 2)
        o_ref[i] = s[b + 1:b + H + 1].astype(o_ref.dtype)   # lane-dense 256-wide store


# --------------------------- wrapper (layout + call) ------------------------ #

def _toeplitz_bands(w_oihw, width):
    """(Co, Ci, 3, KW) conv weight -> KH banded matrices T[kh] of (W*Ci, W*Co).

    T[kh, wi*Ci + ci, wo*Co + co] = w[co, ci, kh, wi - wo + 1] inside the band, else 0.
    `rows(M, W*Ci) @ T[kh]` == the kw/ci part of a pad-1 conv for that kh tap.
    """
    co_n, ci_n, kh_n, kw_n = w_oihw.shape
    wt = jnp.transpose(w_oihw, (2, 3, 1, 0))                    # (kh, kw, ci, co)
    wi = jnp.arange(width)[:, None]
    wo = jnp.arange(width)[None, :]
    kw = wi - wo + 1                                            # (W, W)
    valid = ((kw >= 0) & (kw < kw_n)).astype(wt.dtype)
    t = wt[:, jnp.clip(kw, 0, kw_n - 1)]                        # (kh, wi, wo, ci, co)
    t = t * valid[None, :, :, None, None]
    t = jnp.transpose(t, (0, 1, 3, 2, 4))                       # (kh, wi, ci, wo, co)
    return t.reshape(kh_n, width * ci_n, width * co_n)


def _stack_taps(p):
    """(B, R, K) padded rows -> (B, R, 3K): lane block j holds rows shifted by j-1."""
    blk0 = jnp.pad(p[:, :-1], ((0, 0), (1, 0), (0, 0)))
    blk2 = jnp.pad(p[:, 1:], ((0, 0), (0, 1), (0, 0)))
    return jnp.concatenate([blk0, p, blk2], axis=-1)


def _resident_spec(shape):
    """Constant-index (never re-DMA'd) weight/bias spec, single-buffered if possible."""
    index_map = lambda b: (0,) * len(shape)
    try:
        return pl.BlockSpec(shape, index_map, pipeline_mode=pl.Buffered(1))
    except Exception:  # older JAX without BlockSpec.pipeline_mode / pl.Buffered
        return pl.BlockSpec(shape, index_map)


@jax.jit
def up_projection_block(x_nchw, params):
    N, C, H, W = x_nchw.shape
    C4 = 4 * C
    WC, WC4 = W * C, W * C4

    # Grid: up to 2 parallel image-blocks (one per v7x TensorCore); the rest of the
    # batch folds into the matmul M dimension inside each block.
    n_blocks = 2 if (N % 2 == 0 and N >= 2) else 1
    ipb = N // n_blocks                       # images per block
    Rb = ipb * (H + 2)                        # padded rows per block (2 guards/image)

    # NCHW -> lane-dense rows (H on sublanes, W*C on lanes), pre-padded in H and
    # pre-stacked along the 3 kh taps.  Tiny XLA layout op (a few KB).
    x_rows = jnp.transpose(x_nchw, (0, 2, 3, 1)).reshape(n_blocks, ipb, H, WC)
    x_pad = jnp.pad(x_rows, ((0, 0), (0, 0), (1, 1), (0, 0))).reshape(n_blocks, Rb, WC)
    x_stk = _stack_taps(x_pad).astype(jnp.bfloat16)             # (n_blocks, Rb, 3*WC)

    # 6x6/stride-2 conv on PixelShuffle(g) == 3x3/stride-1 conv on g (pre-shuffle).
    w2 = params["w2"].reshape(C, C, 3, 2, 3, 2)                 # (co, c, ah, p, bw, q)
    w2eff = jnp.transpose(w2, (0, 1, 3, 5, 2, 4)).reshape(C, C4, 3, 3)

    # Banded block-Toeplitz weights with the 3 kh taps stacked along K, in bf16.
    t1 = _toeplitz_bands(params["w1"], W).reshape(3 * WC, WC4).astype(jnp.bfloat16)
    t2 = _toeplitz_bands(w2eff, W).reshape(3 * WC4, WC).astype(jnp.bfloat16)
    t3 = _toeplitz_bands(params["w3"], W).reshape(3 * WC, WC4).astype(jnp.bfloat16)
    b1 = jnp.tile(params["b1"], W).reshape(1, WC4).astype(jnp.float32)
    b2 = jnp.tile(params["b2"], W).reshape(1, WC).astype(jnp.float32)
    b3 = jnp.tile(params["b3"], W).reshape(1, WC4).astype(jnp.float32)

    grid_spec = pltpu.PrefetchScalarGridSpec(
        num_scalar_prefetch=0,
        grid=(n_blocks,),
        in_specs=[
            pl.BlockSpec((1, Rb, 3 * WC), lambda b: (b, 0, 0)),   # x, stacked rows
            _resident_spec((3 * WC, WC4)),                        # T1
            _resident_spec((1, WC4)),                             # b1
            _resident_spec((3 * WC4, WC)),                        # T2
            _resident_spec((1, WC)),                              # b2
            _resident_spec((3 * WC, WC4)),                        # T3
            _resident_spec((1, WC4)),                             # b3
        ],
        out_specs=pl.BlockSpec((ipb, H, WC4), lambda b: (b, 0, 0)),
        scratch_shapes=[
            pltpu.VMEM((Rb, 3 * WC4), jnp.bfloat16),   # stacked g (conv2 LHS)
            pltpu.VMEM((Rb, 3 * WC), jnp.bfloat16),    # stacked d (conv3 LHS)
        ],
    )

    s = pl.pallas_call(
        up_projection_kernel,
        out_shape=jax.ShapeDtypeStruct((N, H, WC4), x_nchw.dtype),
        grid_spec=grid_spec,
        compiler_params=pltpu.CompilerParams(
            dimension_semantics=("parallel",)),
    )(x_stk, t1, b1, t2, b2, t3, b3)

    # Final PixelShuffle(2) + NCHW output in a single reshape/transpose (tiny).
    out = s.reshape(N, H, W, C, 2, 2)                           # (n, h, w, c, i, j)
    out = jnp.transpose(out, (0, 3, 1, 4, 2, 5)).reshape(N, C, 2 * H, 2 * W)
    return out


# ------------------------- pure-JAX reference (check) ----------------------- #

def _conv_ref(x_nchw, w_oihw, b, stride, padding):
    out = jax.lax.conv_general_dilated(
        x_nchw, w_oihw, window_strides=(stride, stride),
        padding=((padding, padding), (padding, padding)),
        dimension_numbers=("NCHW", "OIHW", "NCHW"))
    return out + b[None, :, None, None]


def _pixel_shuffle_nchw(x, r=2):
    N, C4, H, W = x.shape
    C = C4 // (r * r)
    x = x.reshape(N, C, r, r, H, W)
    x = jnp.transpose(x, (0, 1, 4, 2, 5, 3))
    return x.reshape(N, C, H * r, W * r)


def reference_forward(x, p):
    lr = lambda t: jnp.where(t >= 0, t, NEG_SLOPE * t)
    h0 = lr(_pixel_shuffle_nchw(_conv_ref(x, p["w1"], p["b1"], 1, 1)))
    l0r = lr(_conv_ref(h0, p["w2"], p["b2"], 2, 2))
    h1 = lr(_pixel_shuffle_nchw(_conv_ref(l0r - x, p["w3"], p["b3"], 1, 1)))
    return h1 + h0


# ---------------------------------- main ------------------------------------ #

if __name__ == "__main__":
    key = jax.random.PRNGKey(0)
    ks = jax.random.split(key, 7)

    N, C, H, W = 2, 4, 16, 16          # num_filter = C = 4
    x = jax.random.normal(ks[0], (N, C, H, W), jnp.float32)

    params = {
        "w1": 0.1 * jax.random.normal(ks[1], (4 * C, C, 3, 3), jnp.float32),  # PSBlock 1
        "b1": 0.1 * jax.random.normal(ks[2], (4 * C,), jnp.float32),
        "w2": 0.1 * jax.random.normal(ks[3], (C, C, 6, 6), jnp.float32),      # up_conv2
        "b2": 0.1 * jax.random.normal(ks[4], (C,), jnp.float32),
        "w3": 0.1 * jax.random.normal(ks[5], (4 * C, C, 3, 3), jnp.float32),  # PSBlock 2
        "b3": 0.1 * jax.random.normal(ks[6], (4 * C,), jnp.float32),
    }

    out = jax.block_until_ready(up_projection_block(x, params))
    assert out.shape == (N, C, 2 * H, 2 * W), out.shape

    ref = jax.block_until_ready(reference_forward(x, params))
    max_err = float(jnp.max(jnp.abs(out - ref)))
    # Tolerance note: the kernel keeps bf16 activations/weights with f32 accumulation.
    # TPU's default matmul/conv precision already multiplies in bf16, so the only
    # extra rounding vs. the XLA reference is bf16 x/g in the two residual adds and
    # re-ordered f32 sums (expected max ~5e-3 here).  A structural bug (wrong 6x6 tap
    # / phase mapping, guard-row leak between images) gives O(0.1-1) errors, so 2e-2
    # still catches those decisively.
    assert max_err < 2e-2, f"max abs error {max_err}"

    print("KERNEL_OK")
</pallas_src>

<mosaic_0001>
module attributes {stable_mosaic.version = 11 : i64} {
  func.func @up_projection_kernel(%arg0: i32, %arg1: memref<1x18x192xbf16, #tpu.memory_space<vmem>>, %arg2: memref<192x256xbf16, #tpu.memory_space<vmem>>, %arg3: memref<1x256xf32, #tpu.memory_space<vmem>>, %arg4: memref<768x64xbf16, #tpu.memory_space<vmem>>, %arg5: memref<1x64xf32, #tpu.memory_space<vmem>>, %arg6: memref<192x256xbf16, #tpu.memory_space<vmem>>, %arg7: memref<1x256xf32, #tpu.memory_space<vmem>>, %arg8: memref<1x16x256xf32, #tpu.memory_space<vmem>>, %arg9: memref<18x768xbf16, #tpu.memory_space<vmem>>, %arg10: memref<18x192xbf16, #tpu.memory_space<vmem>>) attributes {dimension_semantics = [#tpu.dimension_semantics<parallel>], iteration_bounds = array<i64: 2>, scalar_prefetch = 0 : i64, scratch_operands = 2 : i64, tpu.core_type = #tpu.core_type<tc>, window_params = [{transform_indices = @transform_0, window_bounds = array<i64: 1, 18, 192>}, {pipeline_mode = #tpu.pipeline_mode<synchronous>, transform_indices = @transform_1, window_bounds = array<i64: 192, 256>}, {pipeline_mode = #tpu.pipeline_mode<synchronous>, transform_indices = @transform_2, window_bounds = array<i64: 1, 256>}, {pipeline_mode = #tpu.pipeline_mode<synchronous>, transform_indices = @transform_3, window_bounds = array<i64: 768, 64>}, {pipeline_mode = #tpu.pipeline_mode<synchronous>, transform_indices = @transform_4, window_bounds = array<i64: 1, 64>}, {pipeline_mode = #tpu.pipeline_mode<synchronous>, transform_indices = @transform_5, window_bounds = array<i64: 192, 256>}, {pipeline_mode = #tpu.pipeline_mode<synchronous>, transform_indices = @transform_6, window_bounds = array<i64: 1, 256>}, {transform_indices = @transform_7, window_bounds = array<i64: 1, 16, 256>}]} {
    %c0 = arith.constant 0 : index
    %c0_0 = arith.constant 0 : index
    %c0_1 = arith.constant 0 : index
    %0 = vector.load %arg1[%c0, %c0_0, %c0_1] : memref<1x18x192xbf16, #tpu.memory_space<vmem>>, vector<1x18x192xbf16>
    %1 = vector.shape_cast %0 : vector<1x18x192xbf16> to vector<18x192xbf16>
    %2 = vector.extract_strided_slice %1 {offsets = [0, 64], sizes = [18, 64], strides = [1, 1]} : vector<18x192xbf16> to vector<18x64xbf16>
    %3 = arith.extf %2 : vector<18x64xbf16> to vector<18x64xf32>
    %c0_2 = arith.constant 0 : index
    %c0_3 = arith.constant 0 : index
    %4 = vector.load %arg2[%c0_2, %c0_3] : memref<192x256xbf16, #tpu.memory_space<vmem>>, vector<192x256xbf16>
    %cst = arith.constant dense<0.000000e+00> : vector<18x256xf32>
    %5 = tpu.matmul %1, %4, %cst {dimension_numbers = #tpu.dot_dimension_numbers<[1], [0], [0], [1], [0, 0, 1, 1], [], []>} : vector<18x192xbf16>, vector<192x256xbf16>, vector<18x256xf32> -> vector<18x256xf32>
    %c0_4 = arith.constant 0 : index
    %c0_5 = arith.constant 0 : index
    %6 = vector.load %arg3[%c0_4, %c0_5] : memref<1x256xf32, #tpu.memory_space<vmem>>, vector<1x256xf32>
    %7 = vector.broadcast %6 : vector<1x256xf32> to vector<18x256xf32>
    %8 = arith.addf %5, %7 : vector<18x256xf32>
    %cst_6 = arith.constant 0.000000e+00 : f32
    %9 = vector.broadcast %cst_6 : f32 to vector<18x256xf32>
    %10 = arith.cmpf oge, %8, %9 : vector<18x256xf32>
    %cst_7 = arith.constant 2.000000e-01 : f32
    %11 = vector.broadcast %cst_7 : f32 to vector<18x256xf32>
    %12 = arith.mulf %11, %8 : vector<18x256xf32>
    %13 = arith.select %10, %8, %12 : vector<18x256xi1>, vector<18x256xf32>
    %cst_8 = arith.constant 0.000000e+00 : bf16
    %14 = vector.broadcast %cst_8 : bf16 to vector<2x768xbf16>
    %c0_9 = arith.constant 0 : index
    %c0_10 = arith.constant 0 : index
    %15 = vector.load %arg9[%c0_9, %c0_10] : memref<18x768xbf16, #tpu.memory_space<vmem>>, vector<2x768xbf16>
    tpu.vector_store %arg9[%c0_9, %c0_10], %14 {strides = array<i32>} : memref<18x768xbf16, #tpu.memory_space<vmem>>, vector<2x768xbf16>,
    %c16 = arith.constant 16 : index
    %c0_11 = arith.constant 0 : index
    %16 = vector.load %arg9[%c16, %c0_11] : memref<18x768xbf16, #tpu.memory_space<vmem>>, vector<2x768xbf16>
    tpu.vector_store %arg9[%c16, %c0_11], %14 {strides = array<i32>} : memref<18x768xbf16, #tpu.memory_space<vmem>>, vector<2x768xbf16>,
    %17 = vector.extract_strided_slice %13 {offsets = [1, 0], sizes = [16, 256], strides = [1, 1]} : vector<18x256xf32> to vector<16x256xf32>
    %18 = arith.truncf %17 : vector<16x256xf32> to vector<16x256xbf16>
    %c2 = arith.constant 2 : index
    %c0_12 = arith.constant 0 : index
    %19 = vector.load %arg9[%c2, %c0_12] : memref<18x768xbf16, #tpu.memory_space<vmem>>, vector<16x256xbf16>
    tpu.vector_store %arg9[%c2, %c0_12], %18 {strides = array<i32>} : memref<18x768xbf16, #tpu.memory_space<vmem>>, vector<16x256xbf16>,
    %c1 = arith.constant 1 : index
    %c256 = arith.constant 256 : index
    %20 = vector.load %arg9[%c1, %c256] : memref<18x768xbf16, #tpu.memory_space<vmem>>, vector<16x256xbf16>
    tpu.vector_store %arg9[%c1, %c256], %18 {strides = array<i32>} : memref<18x768xbf16, #tpu.memory_space<vmem>>, vector<16x256xbf16>,
    %c0_13 = arith.constant 0 : index
    %c512 = arith.constant 512 : index
    %21 = vector.load %arg9[%c0_13, %c512] : memref<18x768xbf16, #tpu.memory_space<vmem>>, vector<16x256xbf16>
    tpu.vector_store %arg9[%c0_13, %c512], %18 {strides = array<i32>} : memref<18x768xbf16, #tpu.memory_space<vmem>>, vector<16x256xbf16>,
    %c0_14 = arith.constant 0 : index
    %c0_15 = arith.constant 0 : index
    %22 = vector.load %arg9[%c0_14, %c0_15] : memref<18x768xbf16, #tpu.memory_space<vmem>>, vector<18x768xbf16>
    %c0_16 = arith.constant 0 : index
    %c0_17 = arith.constant 0 : index
    %23 = vector.load %arg4[%c0_16, %c0_17] : memref<768x64xbf16, #tpu.memory_space<vmem>>, vector<768x64xbf16>
    %cst_18 = arith.constant dense<0.000000e+00> : vector<18x64xf32>
    %24 = tpu.matmul %22, %23, %cst_18 {dimension_numbers = #tpu.dot_dimension_numbers<[1], [0], [0], [1], [0, 0, 1, 1], [], []>} : vector<18x768xbf16>, vector<768x64xbf16>, vector<18x64xf32> -> vector<18x64xf32>
    %c0_19 = arith.constant 0 : index
    %c0_20 = arith.constant 0 : index
    %25 = vector.load %arg5[%c0_19, %c0_20] : memref<1x64xf32, #tpu.memory_space<vmem>>, vector<1x64xf32>
    %26 = vector.broadcast %25 : vector<1x64xf32> to vector<18x64xf32>
    %27 = arith.addf %24, %26 : vector<18x64xf32>
    %cst_21 = arith.constant 0.000000e+00 : f32
    %28 = vector.broadcast %cst_21 : f32 to vector<18x64xf32>
    %29 = arith.cmpf oge, %27, %28 : vector<18x64xf32>
    %cst_22 = arith.constant 2.000000e-01 : f32
    %30 = vector.broadcast %cst_22 : f32 to vector<18x64xf32>
    %31 = arith.mulf %30, %27 : vector<18x64xf32>
    %32 = arith.select %29, %27, %31 : vector<18x64xi1>, vector<18x64xf32>
    %33 = arith.subf %32, %3 : vector<18x64xf32>
    %cst_23 = arith.constant 0.000000e+00 : bf16
    %34 = vector.broadcast %cst_23 : bf16 to vector<2x192xbf16>
    %c0_24 = arith.constant 0 : index
    %c0_25 = arith.constant 0 : index
    %35 = vector.load %arg10[%c0_24, %c0_25] : memref<18x192xbf16, #tpu.memory_space<vmem>>, vector<2x192xbf16>
    tpu.vector_store %arg10[%c0_24, %c0_25], %34 {strides = array<i32>} : memref<18x192xbf16, #tpu.memory_space<vmem>>, vector<2x192xbf16>,
    %c16_26 = arith.constant 16 : index
    %c0_27 = arith.constant 0 : index
    %36 = vector.load %arg10[%c16_26, %c0_27] : memref<18x192xbf16, #tpu.memory_space<vmem>>, vector<2x192xbf16>
    tpu.vector_store %arg10[%c16_26, %c0_27], %34 {strides = array<i32>} : memref<18x192xbf16, #tpu.memory_space<vmem>>, vector<2x192xbf16>,
    %37 = vector.extract_strided_slice %33 {offsets = [1, 0], sizes = [16, 64], strides = [1, 1]} : vector<18x64xf32> to vector<16x64xf32>
    %38 = arith.truncf %37 : vector<16x64xf32> to vector<16x64xbf16>
    %c2_28 = arith.constant 2 : index
    %c0_29 = arith.constant 0 : index
    %39 = vector.load %arg10[%c2_28, %c0_29] : memref<18x192xbf16, #tpu.memory_space<vmem>>, vector<16x64xbf16>
    tpu.vector_store %arg10[%c2_28, %c0_29], %38 {strides = array<i32>} : memref<18x192xbf16, #tpu.memory_space<vmem>>, vector<16x64xbf16>,
    %c1_30 = arith.constant 1 : index
    %c64 = arith.constant 64 : index
    %40 = vector.load %arg10[%c1_30, %c64] : memref<18x192xbf16, #tpu.memory_space<vmem>>, vector<16x64xbf16>
    tpu.vector_store %arg10[%c1_30, %c64], %38 {strides = array<i32>} : memref<18x192xbf16, #tpu.memory_space<vmem>>, vector<16x64xbf16>,
    %c0_31 = arith.constant 0 : index
    %c128 = arith.constant 128 : index
    %41 = vector.load %arg10[%c0_31, %c128] : memref<18x192xbf16, #tpu.memory_space<vmem>>, vector<16x64xbf16>
    tpu.vector_store %arg10[%c0_31, %c128], %38 {strides = array<i32>} : memref<18x192xbf16, #tpu.memory_space<vmem>>, vector<16x64xbf16>,
    %c0_32 = arith.constant 0 : index
    %c0_33 = arith.constant 0 : index
    %42 = vector.load %arg10[%c0_32, %c0_33] : memref<18x192xbf16, #tpu.memory_space<vmem>>, vector<18x192xbf16>
    %c0_34 = arith.constant 0 : index
    %c0_35 = arith.constant 0 : index
    %43 = vector.load %arg6[%c0_34, %c0_35] : memref<192x256xbf16, #tpu.memory_space<vmem>>, vector<192x256xbf16>
    %cst_36 = arith.constant dense<0.000000e+00> : vector<18x256xf32>
    %44 = tpu.matmul %42, %43, %cst_36 {dimension_numbers = #tpu.dot_dimension_numbers<[1], [0], [0], [1], [0, 0, 1, 1], [], []>} : vector<18x192xbf16>, vector<192x256xbf16>, vector<18x256xf32> -> vector<18x256xf32>
    %c0_37 = arith.constant 0 : index
    %c0_38 = arith.constant 0 : index
    %45 = vector.load %arg7[%c0_37, %c0_38] : memref<1x256xf32, #tpu.memory_space<vmem>>, vector<1x256xf32>
    %46 = vector.broadcast %45 : vector<1x256xf32> to vector<18x256xf32>
    %47 = arith.addf %44, %46 : vector<18x256xf32>
    %cst_39 = arith.constant 0.000000e+00 : f32
    %48 = vector.broadcast %cst_39 : f32 to vector<18x256xf32>
    %49 = arith.cmpf oge, %47, %48 : vector<18x256xf32>
    %cst_40 = arith.constant 2.000000e-01 : f32
    %50 = vector.broadcast %cst_40 : f32 to vector<18x256xf32>
    %51 = arith.mulf %50, %47 : vector<18x256xf32>
    %52 = arith.select %49, %47, %51 : vector<18x256xi1>, vector<18x256xf32>
    %53 = arith.addf %52, %13 : vector<18x256xf32>
    %54 = vector.extract_strided_slice %53 {offsets = [1, 0], sizes = [16, 256], strides = [1, 1]} : vector<18x256xf32> to vector<16x256xf32>
    %c0_41 = arith.constant 0 : index
    %c0_42 = arith.constant 0 : index
    %c0_43 = arith.constant 0 : index
    %55 = vector.load %arg8[%c0_41, %c0_42, %c0_43] : memref<1x16x256xf32, #tpu.memory_space<vmem>>, vector<1x16x256xf32>
    %56 = vector.shape_cast %55 : vector<1x16x256xf32> to vector<16x256xf32>
    %57 = vector.shape_cast %54 : vector<16x256xf32> to vector<1x16x256xf32>
    tpu.vector_store %arg8[%c0_41, %c0_42, %c0_43], %57 {strides = array<i32>} : memref<1x16x256xf32, #tpu.memory_space<vmem>>, vector<1x16x256xf32>,
    return
  }
  func.func @transform_0(%arg0: i32) -> (i32, i32, i32) {
    %c0_i32 = arith.constant 0 : i32
    %c0_i32_0 = arith.constant 0 : i32
    %c0_i32_1 = arith.constant 0 : i32
    return %arg0, %c0_i32, %c0_i32_0 : i32, i32, i32
  }
  func.func @transform_1(%arg0: i32) -> (i32, i32) {
    %c0_i32 = arith.constant 0 : i32
    %c0_i32_0 = arith.constant 0 : i32
    %c0_i32_1 = arith.constant 0 : i32
    return %c0_i32, %c0_i32_0 : i32, i32
  }
  func.func @transform_2(%arg0: i32) -> (i32, i32) {
    %c0_i32 = arith.constant 0 : i32
    %c0_i32_0 = arith.constant 0 : i32
    %c0_i32_1 = arith.constant 0 : i32
    return %c0_i32, %c0_i32_0 : i32, i32
  }
  func.func @transform_3(%arg0: i32) -> (i32, i32) {
    %c0_i32 = arith.constant 0 : i32
    %c0_i32_0 = arith.constant 0 : i32
    %c0_i32_1 = arith.constant 0 : i32
    return %c0_i32, %c0_i32_0 : i32, i32
  }
  func.func @transform_4(%arg0: i32) -> (i32, i32) {
    %c0_i32 = arith.constant 0 : i32
    %c0_i32_0 = arith.constant 0 : i32
    %c0_i32_1 = arith.constant 0 : i32
    return %c0_i32, %c0_i32_0 : i32, i32
  }
  func.func @transform_5(%arg0: i32) -> (i32, i32) {
    %c0_i32 = arith.constant 0 : i32
    %c0_i32_0 = arith.constant 0 : i32
    %c0_i32_1 = arith.constant 0 : i32
    return %c0_i32, %c0_i32_0 : i32, i32
  }
  func.func @transform_6(%arg0: i32) -> (i32, i32) {
    %c0_i32 = arith.constant 0 : i32
    %c0_i32_0 = arith.constant 0 : i32
    %c0_i32_1 = arith.constant 0 : i32
    return %c0_i32, %c0_i32_0 : i32, i32
  }
  func.func @transform_7(%arg0: i32) -> (i32, i32, i32) {
    %c0_i32 = arith.constant 0 : i32
    %c0_i32_0 = arith.constant 0 : i32
    %c0_i32_1 = arith.constant 0 : i32
    return %arg0, %c0_i32, %c0_i32_0 : i32, i32, i32
  }
}

</mosaic_0001>

<llo_original>
// kernel: tile.18
$region0: #{tile.18}
  #allocation0 [shape = 's32[1]{0}', space=sflag, size = 0x4, scoped, tag = 'scoped memory for tile.18']
  %s0 = inlined_call_operand.vmem [shape: f32[16], index: 0, kind: input, shape index: {}]
  %s1 = inlined_call_operand.vmem [shape: f32[16,16], index: 1, kind: output, shape index: {}]
  // Predicated region
  $region2: #{tile.18} parent=0 // pred_check
    _
  $region3: #{tile.18} parent=0 // pred_check_branch
    %3 = sbr.rel (0) target = $region5
  $region4: #{tile.18} parent=0 // pred_region
    _
  $region5: #{tile.18} parent=0 // pred_fallthru
    _
  %v4 = vld [vmem:[%s0] ss:$0 sm:$0xff]
  %5 = vst [vmem:[%s1] sm:$0xff] %v4
  %s6 = scalar_lea.vmem %s1, 8
  %7 = vst [vmem:[%s6] sm:$0xff] %v4

// kernel: tile.19
$region0: #{tile.19}
  %s0 = inlined_call_operand.vmem [shape: f32[16,16], index: 0, kind: input, shape index: {}]
  %s1 = inlined_call_operand.vmem [shape: f32[1,256], index: 1, kind: output, shape index: {}]
  $region1: #{tile.19} parent=0
    #allocation0 [shape = 'u8[8192]{0}', space=vmem, size = 0x2000, scoped, tag = 'scoped mem for output reshape']
    %s2 = smov 3
    %v3 = vld [vmem:[%s0] ss:$8 sm:%s2]
    %vm4 = vcmask 130048
    %5 = vst.msk [vmem:[#allocation0] ss:$8 sm:$0x3] %vm4, %v3
    %s6 = scalar_lea.vmem %s0, 7
    %s7 = smov 3
    %v8 = vld [vmem:[%s6] ss:$8 sm:%s7]
    %9 = vrot.lane.b32.xlu0 %v8, 112
    %v10 = vpop.permute.xlu0 %9
    %vm11 = vcmask 1048448
    %12 = vst.msk [vmem:[#allocation0] ss:$8 sm:$0x3] %vm11, %v10
    %s13 = scalar_lea.vmem %s0, 6
    %s14 = smov 3
    %v15 = vld [vmem:[%s13] ss:$8 sm:%s14]
    %16 = vrot.lane.b32.xlu0 %v15, 96
    %v17 = vpop.permute.xlu0 %16
    %vm18 = vcmask 917248
    %19 = vst.msk [vmem:[#allocation0] ss:$8 sm:$0x3] %vm18, %v17
    %s20 = scalar_lea.vmem %s0, 5
    %s21 = smov 3
    %v22 = vld [vmem:[%s20] ss:$8 sm:%s21]
    %23 = vrot.lane.b32.xlu0 %v22, 80
    %v24 = vpop.permute.xlu0 %23
    %vm25 = vcmask 786048
    %26 = vst.msk [vmem:[#allocation0] ss:$8 sm:$0x3] %vm25, %v24
    %s27 = scalar_lea.vmem %s0, 4
    %s28 = smov 3
    %v29 = vld [vmem:[%s27] ss:$8 sm:%s28]
    %30 = vrot.lane.b32.xlu0 %v29, 64
    %v31 = vpop.permute.xlu0 %30
    %vm32 = vcmask 654848
    %33 = vst.msk [vmem:[#allocation0] ss:$8 sm:$0x3] %vm32, %v31
    %s34 = scalar_lea.vmem %s0, 3
    %s35 = smov 3
    %v36 = vld [vmem:[%s34] ss:$8 sm:%s35]
    %37 = vrot.lane.b32.xlu0 %v36, 48
    %v38 = vpop.permute.xlu0 %37
    %vm39 = vcmask 523648
    %40 = vst.msk [vmem:[#allocation0] ss:$8 sm:$0x3] %vm39, %v38
    %s41 = scalar_lea.vmem %s0, 2
    %s42 = smov 3
    %v43 = vld [vmem:[%s41] ss:$8 sm:%s42]
    %44 = vrot.lane.b32.xlu0 %v43, 32
    %v45 = vpop.permute.xlu0 %44
    %vm46 = vcmask 392448
    %47 = vst.msk [vmem:[#allocation0] ss:$8 sm:$0x3] %vm46, %v45
    %s48 = scalar_lea.vmem %s0, 1
    %s49 = smov 3
    %v50 = vld [vmem:[%s48] ss:$8 sm:%s49]
    %51 = vrot.lane.b32.xlu0 %v50, 16
    %v52 = vpop.permute.xlu0 %51
    %vm53 = vcmask 261248
    %54 = vst.msk [vmem:[#allocation0] ss:$8 sm:$0x3] %vm53, %v52
    %s56 = sshllo.u32 0, 1
    %v58 = vld [vmem:[#allocation0] sm:%s56]
    %s59 = sshllo.u32 0, 1
    %60 = vst [vmem:[%s1] sm:%s59] %v58
    %s61 = scalar_lea.vmem [#allocation0], 8
    %v62 = vld [vmem:[%s61] sm:%s56]
    %s63 = sshllo.u32 0, 1
    %s64 = scalar_lea.vmem %s1, 1
    %65 = vst [vmem:[%s64] sm:%s63] %v62

// kernel: tile.23
$region0: #{tile.23}
  #allocation0 [shape = 's32[1]{0}', space=sflag, size = 0x4, scoped, tag = 'scoped memory for tile.23']
  %s0 = inlined_call_operand.vmem [shape: f32[4], index: 0, kind: input, shape index: {}]
  %s1 = inlined_call_operand.vmem [shape: f32[16,4], index: 1, kind: output, shape index: {}]
  // Predicated region
  $region2: #{tile.23} parent=0 // pred_check
    _
  $region3: #{tile.23} parent=0 // pred_check_branch
    %3 = sbr.rel (0) target = $region5
  $region4: #{tile.23} parent=0 // pred_region
    _
  $region5: #{tile.23} parent=0 // pred_fallthru
    _
  %v4 = vld [vmem:[%s0] ss:$0 sm:$0xff]
  %5 = vst [vmem:[%s1] sm:$0xff] %v4
  %s6 = scalar_lea.vmem %s1, 8
  %7 = vst [vmem:[%s6] sm:$0xff] %v4

// kernel: tile.24
$region0: #{tile.24}
  %s0 = inlined_call_operand.vmem [shape: f32[16,4], index: 0, kind: input, shape index: {}]
  %s1 = inlined_call_operand.vmem [shape: f32[1,64], index: 1, kind: output, shape index: {}]
  $region1: #{tile.24} parent=0
    #allocation0 [shape = 'u8[4096]{0}', space=vmem, size = 0x1000, scoped, tag = 'scoped mem for output reshape']
    %v2 = vld [vmem:[%s0] sm:$0x1]
    %vm3 = vcmask 31744
    %4 = vst.msk [vmem:[#allocation0] sm:$0x1] %vm3, %v2
    %s5 = scalar_lea.vmem %s0, 15
    %v6 = vld [vmem:[%s5] sm:$0x1]
    %7 = vrot.lane.b32.xlu0 %v6, 60
    %v8 = vpop.permute.xlu0 %7
    %vm9 = vcmask 523744
    %10 = vst.msk [vmem:[#allocation0] sm:$0x1] %vm9, %v8
    %s11 = scalar_lea.vmem %s0, 14
    %v12 = vld [vmem:[%s11] sm:$0x1]
    %13 = vrot.lane.b32.xlu0 %v12, 56
    %v14 = vpop.permute.xlu0 %13
    %vm15 = vcmask 490944
    %16 = vst.msk [vmem:[#allocation0] sm:$0x1] %vm15, %v14
    %s17 = scalar_lea.vmem %s0, 13
    %v18 = vld [vmem:[%s17] sm:$0x1]
    %19 = vrot.lane.b32.xlu0 %v18, 52
    %v20 = vpop.permute.xlu0 %19
    %vm21 = vcmask 458144
    %22 = vst.msk [vmem:[#allocation0] sm:$0x1] %vm21, %v20
    %s23 = scalar_lea.vmem %s0, 12
    %v24 = vld [vmem:[%s23] sm:$0x1]
    %25 = vrot.lane.b32.xlu0 %v24, 48
    %v26 = vpop.permute.xlu0 %25
    %vm27 = vcmask 425344
    %28 = vst.msk [vmem:[#allocation0] sm:$0x1] %vm27, %v26
    %s29 = scalar_lea.vmem %s0, 11
    %v30 = vld [vmem:[%s29] sm:$0x1]
    %31 = vrot.lane.b32.xlu0 %v30, 44
    %v32 = vpop.permute.xlu0 %31
    %vm33 = vcmask 392544
    %34 = vst.msk [vmem:[#allocation0] sm:$0x1] %vm33, %v32
    %s35 = scalar_lea.vmem %s0, 10
    %v36 = vld [vmem:[%s35] sm:$0x1]
    %37 = vrot.lane.b32.xlu0 %v36, 40
    %v38 = vpop.permute.xlu0 %37
    %vm39 = vcmask 359744
    %40 = vst.msk [vmem:[#allocation0] sm:$0x1] %vm39, %v38
    %s41 = scalar_lea.vmem %s0, 9
    %v42 = vld [vmem:[%s41] sm:$0x1]
    %43 = vrot.lane.b32.xlu0 %v42, 36
    %v44 = vpop.permute.xlu0 %43
    %vm45 = vcmask 326944
    %46 = vst.msk [vmem:[#allocation0] sm:$0x1] %vm45, %v44
    %s47 = scalar_lea.vmem %s0, 8
    %v48 = vld [vmem:[%s47] sm:$0x1]
    %49 = vrot.lane.b32.xlu0 %v48, 32
    %v50 = vpop.permute.xlu0 %49
    %vm51 = vcmask 294144
    %52 = vst.msk [vmem:[#allocation0] sm:$0x1] %vm51, %v50
    %s53 = scalar_lea.vmem %s0, 7
    %v54 = vld [vmem:[%s53] sm:$0x1]
    %55 = vrot.lane.b32.xlu0 %v54, 28
    %v56 = vpop.permute.xlu0 %55
    %vm57 = vcmask 261344
    %58 = vst.msk [vmem:[#allocation0] sm:$0x1] %vm57, %v56
    %s59 = scalar_lea.vmem %s0, 6
    %v60 = vld [vmem:[%s59] sm:$0x1]
    %61 = vrot.lane.b32.xlu0 %v60, 24
    %v62 = vpop.permute.xlu0 %61
    %vm63 = vcmask 228544
    %64 = vst.msk [vmem:[#allocation0] sm:$0x1] %vm63, %v62
    %s65 = scalar_lea.vmem %s0, 5
    %v66 = vld [vmem:[%s65] sm:$0x1]
    %67 = vrot.lane.b32.xlu0 %v66, 20
    %v68 = vpop.permute.xlu0 %67
    %vm69 = vcmask 195744
    %70 = vst.msk [vmem:[#allocation0] sm:$0x1] %vm69, %v68
    %s71 = scalar_lea.vmem %s0, 4
    %v72 = vld [vmem:[%s71] sm:$0x1]
    %73 = vrot.lane.b32.xlu0 %v72, 16
    %v74 = vpop.permute.xlu0 %73
    %vm75 = vcmask 162944
    %76 = vst.msk [vmem:[#allocation0] sm:$0x1] %vm75, %v74
    %s77 = scalar_lea.vmem %s0, 3
    %v78 = vld [vmem:[%s77] sm:$0x1]
    %79 = vrot.lane.b32.xlu0 %v78, 12
    %v80 = vpop.permute.xlu0 %79
    %vm81 = vcmask 130144
    %82 = vst.msk [vmem:[#allocation0] sm:$0x1] %vm81, %v80
    %s83 = scalar_lea.vmem %s0, 2
    %v84 = vld [vmem:[%s83] sm:$0x1]
    %85 = vrot.lane.b32.xlu0 %v84, 8
    %v86 = vpop.permute.xlu0 %85
    %vm87 = vcmask 97344
    %88 = vst.msk [vmem:[#allocation0] sm:$0x1] %vm87, %v86
    %s89 = scalar_lea.vmem %s0, 1
    %v90 = vld [vmem:[%s89] sm:$0x1]
    %91 = vrot.lane.b32.xlu0 %v90, 4
    %v92 = vpop.permute.xlu0 %91
    %vm93 = vcmask 64544
    %94 = vst.msk [vmem:[#allocation0] sm:$0x1] %vm93, %v92
    %s96 = sshllo.u32 0, 1
    %v98 = vld [vmem:[#allocation0] sm:%s96]
    %s99 = sshllo.u32 0, 1
    %100 = vst [vmem:[%s1] sm:%s99] %v98

// kernel: up_projection_block.1
$region0: #{up_projection_block.1}
  #allocation0 [shape = 'u32[]', space=smem, size = 0x4, offset = 0x4, fixed_abs, tag = 'smem constant byte address 0x4 - core index']
  #allocation1 [shape = 'u32[144,128]{1,0:T(1,128)}', space=vmem, size = 0x12000, scoped, tag = 'internal scratch']
  #allocation2 [shape = 'bf16[18,768]{1,0:T(8,128)(2,1)}', space=vmem, size = 0x9000, scoped, tag = 'scratch operand']
  #allocation3 [shape = 'bf16[18,192]{1,0:T(8,128)(2,1)}', space=vmem, size = 0x3000, scoped, tag = 'scratch operand']
  %s0 = inlined_call_operand.vmem [shape: bf16[2,18,192], index: 0, kind: input, shape index: {}]
  %s1 = inlined_call_operand.vmem [shape: bf16[192,256], index: 1, kind: input, shape index: {}]
  %s2 = inlined_call_operand.vmem [shape: f32[1,256], index: 2, kind: input, shape index: {}]
  %s3 = inlined_call_operand.vmem [shape: bf16[768,64], index: 3, kind: input, shape index: {}]
  %s4 = inlined_call_operand.vmem [shape: f32[1,64], index: 4, kind: input, shape index: {}]
  %s5 = inlined_call_operand.vmem [shape: bf16[192,256], index: 5, kind: input, shape index: {}]
  %s6 = inlined_call_operand.vmem [shape: f32[1,256], index: 6, kind: input, shape index: {}]
  %s7 = inlined_call_operand.vmem [shape: f32[2,16,256], index: 7, kind: output, shape index: {}]
  %s8 = sld [smem:[#allocation0]]
  $region61: #{up_projection_block.1} parent=0
    _
  %s10 = ssub.s32 1, %s8
  %s11 = scalar_select 0, %s10, %s8
  loop: start=0, step=1, limit=4
  $region2: #{up_projection_block.1} parent=0 // loop_pre_header
    _
  $region3: #{up_projection_block.1} parent=0 // loop_header
    %s13 = sphi 0, %s17
    %p14 = scmp.ge.s32.totalorder %s13, 4
    %s23 = sphi 0, %s25
    %s26 = sphi 0, %s23
    %s27 = sphi 0, %s26
    %s43 = sphi 0, %s27
    %s47 = sphi 0, %s47
    %s49 = sphi 0, %s47
    %s50 = sphi 0, %s49
    %s64 = sphi 0, %s50
    %s68 = sphi 0, %s68
    %s70 = sphi 0, %s68
    %s71 = sphi 0, %s70
    %s85 = sphi 0, %s71
    %s89 = sphi 0, %s89
    %s91 = sphi 0, %s89
    %s92 = sphi 0, %s91
    %s106 = sphi 0, %s92
    %s110 = sphi 0, %s110
    %s112 = sphi 0, %s110
    %s113 = sphi 0, %s112
    %s127 = sphi 0, %s113
    %s131 = sphi 0, %s131
    %s133 = sphi 0, %s131
    %s134 = sphi 0, %s133
    %s148 = sphi 0, %s134
    %s152 = sphi 0, %s152
    %s154 = sphi 0, %s152
    %s155 = sphi 0, %s154
    %s169 = sphi 0, %s155
    %s175 = sphi 0, %s177
    %s178 = sphi 0, %s175
    %s179 = sphi 0, %s178
    %s195 = sphi 0, %s179
  $region4: #{up_projection_block.1} parent=0 // loop_header_branch
    %16 = sbr.rel (%p14) target = $region8
  $region5: #{up_projection_block.1} parent=0 // loop_body
    %s18 = ssub.s32 %s13, 1
    %s19 = ssub.s32 %s13, 2
    %s20 = sadd.s32 %s13, 1
    %s21 = ssub.s32 %s13, %s20
    %p22 = scmp.eq.s32.totalorder %s21, 0
    %s24 = sadd.s32 %s23, 1
    %s25 = scalar_select %p22, %s23, %s24
    %p28 = pneg %p22
    %p29 = scmp.eq.s32.totalorder %s13, 1
    %p30 = por %p28, %p29
    %p31 = scmp.ne.s32.totalorder %s23, %s26
    %p32 = scmp.eq.s32.totalorder %s13, 0
    %p33 = por %p31, %p32
    %p34 = scmp.ne.s32.totalorder %s23, %s26
    %p35 = scmp.eq.s32.totalorder %s18, 1
    %p36 = por %p34, %p35
    %p37 = scmp.ne.s32.totalorder %s26, %s27
    %p38 = scmp.eq.s32.totalorder %s18, 0
    %p39 = por %p37, %p38
    %p40 = scmp.ne.s32.totalorder %s26, %s27
    %p41 = scmp.eq.s32.totalorder %s19, 1
    %p42 = por %p40, %p41
    %p44 = scmp.ne.s32.totalorder %s27, %s43
    %p45 = scmp.eq.s32.totalorder %s19, 0
    %p46 = por %p44, %p45
    %s48 = sadd.s32 %s47, 1
    %p51 = scmp.eq.s32.totalorder %s13, 1
    %p52 = scmp.ne.s32.totalorder %s47, %s49
    %p53 = scmp.eq.s32.totalorder %s13, 0
    %p54 = por %p52, %p53
    %p55 = scmp.ne.s32.totalorder %s47, %s49
    %p56 = scmp.eq.s32.totalorder %s18, 1
    %p57 = por %p55, %p56
    %p58 = scmp.ne.s32.totalorder %s49, %s50
    %p59 = scmp.eq.s32.totalorder %s18, 0
    %p60 = por %p58, %p59
    %p61 = scmp.ne.s32.totalorder %s49, %s50
    %p62 = scmp.eq.s32.totalorder %s19, 1
    %p63 = por %p61, %p62
    %p65 = scmp.ne.s32.totalorder %s50, %s64
    %p66 = scmp.eq.s32.totalorder %s19, 0
    %p67 = por %p65, %p66
    %s69 = sadd.s32 %s68, 1
    %p72 = scmp.eq.s32.totalorder %s13, 1
    %p73 = scmp.ne.s32.totalorder %s68, %s70
    %p74 = scmp.eq.s32.totalorder %s13, 0
    %p75 = por %p73, %p74
    %p76 = scmp.ne.s32.totalorder %s68, %s70
    %p77 = scmp.eq.s32.totalorder %s18, 1
    %p78 = por %p76, %p77
    %p79 = scmp.ne.s32.totalorder %s70, %s71
    %p80 = scmp.eq.s32.totalorder %s18, 0
    %p81 = por %p79, %p80
    %p82 = scmp.ne.s32.totalorder %s70, %s71
    %p83 = scmp.eq.s32.totalorder %s19, 1
    %p84 = por %p82, %p83
    %p86 = scmp.ne.s32.totalorder %s71, %s85
    %p87 = scmp.eq.s32.totalorder %s19, 0
    %p88 = por %p86, %p87
    %s90 = sadd.s32 %s89, 1
    %p93 = scmp.eq.s32.totalorder %s13, 1
    %p94 = scmp.ne.s32.totalorder %s89, %s91
    %p95 = scmp.eq.s32.totalorder %s13, 0
    %p96 = por %p94, %p95
    %p97 = scmp.ne.s32.totalorder %s89, %s91
    %p98 = scmp.eq.s32.totalorder %s18, 1
    %p99 = por %p97, %p98
    %p100 = scmp.ne.s32.totalorder %s91, %s92
    %p101 = scmp.eq.s32.totalorder %s18, 0
    %p102 = por %p100, %p101
    %p103 = scmp.ne.s32.totalorder %s91, %s92
    %p104 = scmp.eq.s32.totalorder %s19, 1
    %p105 = por %p103, %p104
    %p107 = scmp.ne.s32.totalorder %s92, %s106
    %p108 = scmp.eq.s32.totalorder %s19, 0
    %p109 = por %p107, %p108
    %s111 = sadd.s32 %s110, 1
    %p114 = scmp.eq.s32.totalorder %s13, 1
    %p115 = scmp.ne.s32.totalorder %s110, %s112
    %p116 = scmp.eq.s32.totalorder %s13, 0
    %p117 = por %p115, %p116
    %p118 = scmp.ne.s32.totalorder %s110, %s112
    %p119 = scmp.eq.s32.totalorder %s18, 1
    %p120 = por %p118, %p119
    %p121 = scmp.ne.s32.totalorder %s112, %s113
    %p122 = scmp.eq.s32.totalorder %s18, 0
    %p123 = por %p121, %p122
    %p124 = scmp.ne.s32.totalorder %s112, %s113
    %p125 = scmp.eq.s32.totalorder %s19, 1
    %p126 = por %p124, %p125
    %p128 = scmp.ne.s32.totalorder %s113, %s127
    %p129 = scmp.eq.s32.totalorder %s19, 0
    %p130 = por %p128, %p129
    %s132 = sadd.s32 %s131, 1
    %p135 = scmp.eq.s32.totalorder %s13, 1
    %p136 = scmp.ne.s32.totalorder %s131, %s133
    %p137 = scmp.eq.s32.totalorder %s13, 0
    %p138 = por %p136, %p137
    %p139 = scmp.ne.s32.totalorder %s131, %s133
    %p140 = scmp.eq.s32.totalorder %s18, 1
    %p141 = por %p139, %p140
    %p142 = scmp.ne.s32.totalorder %s133, %s134
    %p143 = scmp.eq.s32.totalorder %s18, 0
    %p144 = por %p142, %p143
    %p145 = scmp.ne.s32.totalorder %s133, %s134
    %p146 = scmp.eq.s32.totalorder %s19, 1
    %p147 = por %p145, %p146
    %p149 = scmp.ne.s32.totalorder %s134, %s148
    %p150 = scmp.eq.s32.totalorder %s19, 0
    %p151 = por %p149, %p150
    %s153 = sadd.s32 %s152, 1
    %p156 = scmp.eq.s32.totalorder %s13, 1
    %p157 = scmp.ne.s32.totalorder %s152, %s154
    %p158 = scmp.eq.s32.totalorder %s13, 0
    %p159 = por %p157, %p158
    %p160 = scmp.ne.s32.totalorder %s152, %s154
    %p161 = scmp.eq.s32.totalorder %s18, 1
    %p162 = por %p160, %p161
    %p163 = scmp.ne.s32.totalorder %s154, %s155
    %p164 = scmp.eq.s32.totalorder %s18, 0
    %p165 = por %p163, %p164
    %p166 = scmp.ne.s32.totalorder %s154, %s155
    %p167 = scmp.eq.s32.totalorder %s19, 1
    %p168 = por %p166, %p167
    %p170 = scmp.ne.s32.totalorder %s155, %s169
    %p171 = scmp.eq.s32.totalorder %s19, 0
    %p172 = por %p170, %p171
    %s173 = ssub.s32 %s13, %s20
    %p174 = scmp.eq.s32.totalorder %s173, 0
    %s176 = sadd.s32 %s175, 1
    %s177 = scalar_select %p174, %s175, %s176
    %p180 = pneg %p174
    %p181 = scmp.eq.s32.totalorder %s13, 1
    %p182 = por %p180, %p181
    %p183 = scmp.ne.s32.totalorder %s175, %s178
    %p184 = scmp.eq.s32.totalorder %s13, 0
    %p185 = por %p183, %p184
    %p186 = scmp.ne.s32.totalorder %s175, %s178
    %p187 = scmp.eq.s32.totalorder %s18, 1
    %p188 = por %p186, %p187
    %p189 = scmp.ne.s32.totalorder %s178, %s179
    %p190 = scmp.eq.s32.totalorder %s18, 0
    %p191 = por %p189, %p190
    %p192 = scmp.ne.s32.totalorder %s178, %s179
    %p193 = scmp.eq.s32.totalorder %s19, 1
    %p194 = por %p192, %p193
    %p196 = scmp.ne.s32.totalorder %s179, %s195
    %p197 = scmp.eq.s32.totalorder %s19, 0
    %p198 = por %p196, %p197
    %p199 = scmp.le.s32.totalorder 1, %s13
    %p200 = scmp.lt.s32.totalorder %s13, 3
    %p201 = pnand %p199, %p200
    %p202 = pneg %p201
    // Predicated region
    $region9: #{up_projection_block.1} parent=5 // pred_check
      _
    $region10: #{up_projection_block.1} parent=5 // pred_check_branch
      %204 = sbr.rel (%p201) target = $region12
    $region11: #{up_projection_block.1} parent=5 // pred_region
      %s205 = ssub.s32 %s13, 1
      // Predicated region
      $region13: #{up_projection_block.1} parent=11 // pred_check
        %p206 = pneg %p60
      $region14: #{up_projection_block.1} parent=11 // pred_check_branch
        %208 = sbr.rel (%p206) target = $region16
      $region15: #{up_projection_block.1} parent=11 // pred_region
        _
      $region16: #{up_projection_block.1} parent=11 // pred_fallthru
        _
      // Predicated region
      $region17: #{up_projection_block.1} parent=11 // pred_check
        %p209 = pneg %p81
      $region18: #{up_projection_block.1} parent=11 // pred_check_branch
        %211 = sbr.rel (%p209) target = $region20
      $region19: #{up_projection_block.1} parent=11 // pred_region
        _
      $region20: #{up_projection_block.1} parent=11 // pred_fallthru
        _
      // Predicated region
      $region21: #{up_projection_block.1} parent=11 // pred_check
        %p212 = pneg %p102
      $region22: #{up_projection_block.1} parent=11 // pred_check_branch
        %214 = sbr.rel (%p212) target = $region24
      $region23: #{up_projection_block.1} parent=11 // pred_region
        _
      $region24: #{up_projection_block.1} parent=11 // pred_fallthru
        _
      // Predicated region
      $region25: #{up_projection_block.1} parent=11 // pred_check
        %p215 = pneg %p123
      $region26: #{up_projection_block.1} parent=11 // pred_check_branch
        %217 = sbr.rel (%p215) target = $region28
      $region27: #{up_projection_block.1} parent=11 // pred_region
        _
      $region28: #{up_projection_block.1} parent=11 // pred_fallthru
        _
      // Predicated region
      $region29: #{up_projection_block.1} parent=11 // pred_check
        %p218 = pneg %p144
      $region30: #{up_projection_block.1} parent=11 // pred_check_branch
        %220 = sbr.rel (%p218) target = $region32
      $region31: #{up_projection_block.1} parent=11 // pred_region
        _
      $region32: #{up_projection_block.1} parent=11 // pred_fallthru
        _
      // Predicated region
      $region33: #{up_projection_block.1} parent=11 // pred_check
        %p221 = pneg %p165
      $region34: #{up_projection_block.1} parent=11 // pred_check_branch
        %223 = sbr.rel (%p221) target = $region36
      $region35: #{up_projection_block.1} parent=11 // pred_region
        _
      $region36: #{up_projection_block.1} parent=11 // pred_fallthru
        _
    $region12: #{up_projection_block.1} parent=5 // pred_fallthru
      _
    %p224 = scmp.lt.s32.totalorder %s13, 2
    // Predicated region
    $region37: #{up_projection_block.1} parent=5 // pred_check
      %p225 = pneg %p224
    $region38: #{up_projection_block.1} parent=5 // pred_check_branch
      %227 = sbr.rel (%p225) target = $region40
    $region39: #{up_projection_block.1} parent=5 // pred_region
      // Predicated region
      $region41: #{up_projection_block.1} parent=39 // pred_check
        %p228 = pneg %p33
      $region42: #{up_projection_block.1} parent=39 // pred_check_branch
        %230 = sbr.rel (%p228) target = $region44
      $region43: #{up_projection_block.1} parent=39 // pred_region
        %p231 = scmp.lt.s32.totalorder %s13, 1
        %s232 = scalar_select %p231, %s13, 1
        %s233 = smul.addr %s232, 6
        %s234 = smul.addr %s233, 4
        %s235 = scalar_lea.vmem %s0, %s234
      $region44: #{up_projection_block.1} parent=39 // pred_fallthru
        _
    $region40: #{up_projection_block.1} parent=5 // pred_fallthru
      _
    %p236 = scmp.le.s32.totalorder 1, %s13
    %p237 = scmp.lt.s32.totalorder %s13, 3
    %p238 = pnand %p236, %p237
    %p239 = pneg %p238
    // Predicated region
    $region45: #{up_projection_block.1} parent=5 // pred_check
      _
    $region46: #{up_projection_block.1} parent=5 // pred_check_branch
      %241 = sbr.rel (%p238) target = $region48
    $region47: #{up_projection_block.1} parent=5 // pred_region
      %s242 = ssub.s32 %s13, 1
      %p243 = scmp.lt.s32.totalorder %s18, 1
      %s244 = scalar_select %p243, %s18, 1
      %s245 = smul.addr %s244, 6
      %s246 = smul.addr %s245, 4
      %s247 = scalar_lea.vmem %s0, %s246
      %p248 = pneg %p39
      %p249 = pneg %p36
      %p250 = pneg %p60
      %p251 = pneg %p57
      %p252 = pneg %p81
      %p253 = pneg %p78
      %p254 = pneg %p102
      %p255 = pneg %p99
      %p256 = pneg %p123
      %p257 = pneg %p120
      %p258 = pneg %p144
      %p259 = pneg %p141
      %p260 = pneg %p165
      %p261 = pneg %p162
      %p262 = pneg %p191
      %p263 = pneg %p188
      %p264 = scmp.lt.s32.totalorder %s18, 1
      %s265 = scalar_select %p264, %s18, 1
      %s266 = smul.addr %s265, 4
      %s267 = smul.addr %s266, 8
      %s268 = scalar_lea.vmem %s7, %s267
      %p269 = scmp.lt.s32.totalorder %s18, 1
      %s270 = scalar_select %p269, %s18, 1
      %s271 = smul.addr %s270, 6
      %s272 = smul.addr %s271, 4
      %s273 = scalar_lea.vmem %s0, %s272
      %p274 = scmp.lt.s32.totalorder %s18, 1
      %s275 = scalar_select %p274, %s18, 1
      %s276 = smul.addr %s275, 4
      %s277 = smul.addr %s276, 8
      %s278 = scalar_lea.vmem %s7, %s277
      %v280 = vld [vmem:[%s273] sm:$0xff]
      %v281 = vld [vmem:[%s273 + $0x8] sm:$0xff]
      %v282 = vld [vmem:[%s273 + $0x10] sm:$0x11]
      %v283 = vunpack.c.l.bf16 %v280
      %v284 = vunpack.c.l.bf16 %v281
      %v285 = vunpack.c.l.bf16 %v282
      %v286 = vld [vmem:[%s1] sm:$0xff]
      %v287 = vld [vmem:[%s1 + $0x8] sm:$0xff]
      %v288 = vld [vmem:[%s1 + $0x10] sm:$0xff]
      %v289 = vld [vmem:[%s1 + $0x18] sm:$0xff]
      %v290 = vld [vmem:[%s1 + $0x20] sm:$0xff]
      %v291 = vld [vmem:[%s1 + $0x28] sm:$0xff]
      %v292 = vld [vmem:[%s1 + $0x30] sm:$0xff]
      %v293 = vld [vmem:[%s1 + $0x38] sm:$0xff]
      %v294 = vld [vmem:[%s1 + $0x40] sm:$0xff]
      %v295 = vld [vmem:[%s1 + $0x48] sm:$0xff]
      %v296 = vld [vmem:[%s1 + $0x50] sm:$0xff]
      %v297 = vld [vmem:[%s1 + $0x58] sm:$0xff]
      %v298 = vld [vmem:[%s1 + $0x60] sm:$0xff]
      %v299 = vld [vmem:[%s1 + $0x68] sm:$0xff]
      %v300 = vld [vmem:[%s1 + $0x70] sm:$0xff]
      %v301 = vld [vmem:[%s1 + $0x78] sm:$0xff]
      %v302 = vld [vmem:[%s1 + $0x80] sm:$0xff]
      %v303 = vld [vmem:[%s1 + $0x88] sm:$0xff]
      %v304 = vld [vmem:[%s1 + $0x90] sm:$0xff]
      %v305 = vld [vmem:[%s1 + $0x98] sm:$0xff]
      %v306 = vld [vmem:[%s1 + $0xa0] sm:$0xff]
      %v307 = vld [vmem:[%s1 + $0xa8] sm:$0xff]
      %v308 = vld [vmem:[%s1 + $0xb0] sm:$0xff]
      %v309 = vld [vmem:[%s1 + $0xb8] sm:$0xff]
      %v310 = vld [vmem:[%s2] sm:$0x3]
      %v312 = vlaneseq
      %v313 = vshrl.u32 %v312, 7
      %v314 = vsub.s32 0, %v313
      %v315 = vrot.slane %v310, %v314
      %v316 = vlaneseq
      %v317 = vshrl.u32 %v316, 7
      %v318 = vsub.s32 1, %v317
      %v319 = vrot.slane %v310, %v318
      %v325 = vunpack.c.l.b16 %v280
      %v326 = vunpack.c.h.b16 %v280
      %v327 = vunpack.c.l.b16 %v281
      %v328 = vunpack.c.h.b16 %v281
      %v329 = vunpack.c.l.b16 %v282
      %v330 = vunpack.c.h.b16 %v282
      %v331 = vpack.c.b16 %v327, %v325
      %v332 = vpack.c.b16 %v328, %v326
      %v333 = vpack.c.b16 %v329, %v329
      %v334 = vpack.c.b16 %v330, %v330
      %v361 = vunpack.c.l.b16 %v286
      %v362 = vunpack.c.h.b16 %v286
      %v363 = vunpack.c.l.b16 %v287
      %v364 = vunpack.c.h.b16 %v287
      %v365 = vunpack.c.l.b16 %v288
      %v366 = vunpack.c.h.b16 %v288
      %v367 = vunpack.c.l.b16 %v289
      %v368 = vunpack.c.h.b16 %v289
      %v369 = vunpack.c.l.b16 %v290
      %v370 = vunpack.c.h.b16 %v290
      %v371 = vunpack.c.l.b16 %v291
      %v372 = vunpack.c.h.b16 %v291
      %v373 = vunpack.c.l.b16 %v292
      %v374 = vunpack.c.h.b16 %v292
      %v375 = vunpack.c.l.b16 %v293
      %v376 = vunpack.c.h.b16 %v293
      %v377 = vunpack.c.l.b16 %v294
      %v378 = vunpack.c.h.b16 %v294
      %v379 = vunpack.c.l.b16 %v295
      %v380 = vunpack.c.h.b16 %v295
      %v381 = vunpack.c.l.b16 %v296
      %v382 = vunpack.c.h.b16 %v296
      %v383 = vunpack.c.l.b16 %v297
      %v384 = vunpack.c.h.b16 %v297
      %v385 = vunpack.c.l.b16 %v298
      %v386 = vunpack.c.h.b16 %v298
      %v387 = vunpack.c.l.b16 %v299
      %v388 = vunpack.c.h.b16 %v299
      %v389 = vunpack.c.l.b16 %v300
      %v390 = vunpack.c.h.b16 %v300
      %v391 = vunpack.c.l.b16 %v301
      %v392 = vunpack.c.h.b16 %v301
      %v393 = vunpack.c.l.b16 %v302
      %v394 = vunpack.c.h.b16 %v302
      %v395 = vunpack.c.l.b16 %v303
      %v396 = vunpack.c.h.b16 %v303
      %v397 = vunpack.c.l.b16 %v304
      %v398 = vunpack.c.h.b16 %v304
      %v399 = vunpack.c.l.b16 %v305
      %v400 = vunpack.c.h.b16 %v305
      %v401 = vunpack.c.l.b16 %v306
      %v402 = vunpack.c.h.b16 %v306
      %v403 = vunpack.c.l.b16 %v307
      %v404 = vunpack.c.h.b16 %v307
      %v405 = vunpack.c.l.b16 %v308
      %v406 = vunpack.c.h.b16 %v308
      %v407 = vunpack.c.l.b16 %v309
      %v408 = vunpack.c.h.b16 %v309
      %v409 = vpack.c.b16 %v363, %v361
      %v410 = vpack.c.b16 %v364, %v362
      %v411 = vpack.c.b16 %v367, %v365
      %v412 = vpack.c.b16 %v368, %v366
      %v413 = vpack.c.b16 %v371, %v369
      %v414 = vpack.c.b16 %v372, %v370
      %v415 = vpack.c.b16 %v375, %v373
      %v416 = vpack.c.b16 %v376, %v374
      %v417 = vpack.c.b16 %v379, %v377
      %v418 = vpack.c.b16 %v380, %v378
      %v419 = vpack.c.b16 %v383, %v381
      %v420 = vpack.c.b16 %v384, %v382
      %v421 = vpack.c.b16 %v387, %v385
      %v422 = vpack.c.b16 %v388, %v386
      %v423 = vpack.c.b16 %v391, %v389
      %v424 = vpack.c.b16 %v392, %v390
      %v425 = vpack.c.b16 %v395, %v393
      %v426 = vpack.c.b16 %v396, %v394
      %v427 = vpack.c.b16 %v399, %v397
      %v428 = vpack.c.b16 %v400, %v398
      %v429 = vpack.c.b16 %v403, %v401
      %v430 = vpack.c.b16 %v404, %v402
      %v431 = vpack.c.b16 %v407, %v405
      %v432 = vpack.c.b16 %v408, %v406
      %vm457 = vcmask 523264
      %v459 = vsel %vm457, %v332, 0
      %v462 = vsel %vm457, %v334, 0
      %464 = vmatprep.subr.bf16.mxu0 %v410
      %465 = vmatpush1.bf16.msra.mxu0 %v409
      %466 = vmatprep.subr.bf16.mxu0 %v412
      %467 = vmatpush1.bf16.msra.mxu0 %v411
      %468 = vmatprep.subr.bf16.mxu0 %v414
      %469 = vmatpush1.bf16.msra.mxu0 %v413
      %470 = vmatprep.subr.bf16.mxu0 %v416
      %471 = vmatpush1.bf16.msra.mxu0 %v415
      %472 = vmatprep.subr.bf16.mxu0 %v418
      %473 = vmatpush1.bf16.msra.mxu0 %v417
      %474 = vmatprep.subr.bf16.mxu0 %v420
      %475 = vmatpush1.bf16.msra.mxu0 %v419
      %476 = vmatprep.subr.bf16.mxu0 %v422
      %477 = vmatpush1.bf16.msra.mxu0 %v421
      %478 = vmatprep.subr.bf16.mxu0 %v424
      %479 = vmatpush1.bf16.msra.mxu0 %v423
      %480 = vmatprep.subr.bf16.mxu0 %v426
      %481 = vmatpush1.bf16.msra.mxu0 %v425
      %482 = vmatprep.subr.bf16.mxu0 %v428
      %483 = vmatpush1.bf16.msra.mxu0 %v427
      %484 = vmatprep.subr.bf16.mxu0 %v430
      %485 = vmatpush1.bf16.msra.mxu0 %v429
      %486 = vmatprep.subr.bf16.mxu0 %v432
      %487 = vmatpush1.bf16.msra.mxu0 %v431
      %488 = vmatprep.subr.bf16.mxu0 0
      %489 = vmatpush1.bf16.msra.mxu0 0
      %490 = vmatprep.subr.bf16.mxu0 0
      %491 = vmatpush1.bf16.msra.mxu0 0
      %492 = vmatprep.subr.bf16.mxu0 0
      %493 = vmatpush1.bf16.msra.mxu0 0
      %494 = vmatprep.subr.bf16.mxu0 0
      %495 = vmatpush1.bf16.msra.mxu0 0
      %496 = vmatprep.mubr.bf16.mxu0 %v459
      %497 = vmatmul.mubr.bf16.gmra.mrb[0].mxu0 %v331
      %v498 = vpop.f32.mrb[0].mxu0
      %v499 = vadd.f32 %v315, %v498
      %v500 = vpop.f32.mrb[0].mxu0
      %v501 = vadd.f32 %v319, %v500
      %v502 = vpop.f32.mrb[0].mxu0
      %v503 = vadd.f32 %v315, %v502
      %v504 = vpop.f32.mrb[0].mxu0
      %v505 = vadd.f32 %v319, %v504
      %506 = vmatprep.mubr.bf16.mxu0 %v462
      %507 = vmatmul.mubr.bf16.gmra.mrb[0].mxu0 %v333
      %v508 = vpop.f32.mrb[0].mxu0
      %v509 = vadd.f32 %v315, %v508
      %v510 = vpop.f32.mrb[0].mxu0
      %v511 = vadd.f32 %v319, %v510
      %v512 = vpop.f32.mrb[0].mxu0
      %v513 = vpop.f32.mrb[0].mxu0
      %514 = vdwg.mxu0
      %vm515 = vcmp.ge.f32.partialorder %v499, 0.0
      %vm516 = vcmp.ge.f32.partialorder %v501, 0.0
      %vm517 = vcmp.ge.f32.partialorder %v503, 0.0
      %vm518 = vcmp.ge.f32.partialorder %v505, 0.0
      %vm519 = vcmp.ge.f32.partialorder %v509, 0.0
      %vm520 = vcmp.ge.f32.partialorder %v511, 0.0
      %v521 = vmul.f32 %v499, 0.2
      %v522 = vmul.f32 %v501, 0.2
      %v523 = vmul.f32 %v503, 0.2
      %v524 = vmul.f32 %v505, 0.2
      %v525 = vmul.f32 %v509, 0.2
      %v526 = vmul.f32 %v511, 0.2
      %v527 = vsel %vm515, %v499, %v521
      %v528 = vsel %vm516, %v501, %v522
      %v529 = vsel %vm517, %v503, %v523
      %v530 = vsel %vm518, %v505, %v524
      %v531 = vsel %vm519, %v509, %v525
      %v532 = vsel %vm520, %v511, %v526
      %533 = vst [vmem:[#allocation2] sm:$0x11] 0
      %534 = vst [vmem:[#allocation2 + $0x8] sm:$0x11] 0
      %535 = vst [vmem:[#allocation2 + $0x10] sm:$0x11] 0
      %536 = vst [vmem:[#allocation2 + $0x30] sm:$0x11] 0
      %537 = vst [vmem:[#allocation2 + $0x38] sm:$0x11] 0
      %538 = vst [vmem:[#allocation2 + $0x40] sm:$0x11] 0
      %v539 = vpack.c.bf16 %v529, %v527
      %v540 = vpack.c.bf16 %v530, %v528
      %v541 = vpack.c.bf16 %v531, %v531
      %v542 = vpack.c.bf16 %v532, %v532
      %v547 = vunpack.c.l.b16 %v539
      %v548 = vunpack.c.l.b16 %v540
      %v549 = vunpack.c.h.b16 %v539
      %v550 = vunpack.c.h.b16 %v540
      %v551 = vunpack.c.l.b16 %v541
      %v552 = vunpack.c.l.b16 %v542
      %v553 = vpack.c.b16 %v548, %v547
      %v554 = vpack.c.b16 %v550, %v549
      %v555 = vpack.c.b16 %v552, %v551
      %vm556 = vsmask.f32 256
      %vm557 = vsmask.f32 4368
      %vm558 = vmor %vm556, %vm557
      %v560 = vshrl.u32 %v553, 16
      %v562 = vrot.slane %v560, 7
      %v563 = vshll.u32 %v553, 16
      %v565 = vor.u32 %v562, %v563
      %v566 = vrot.slane %v562, 4
      %v568 = vshrl.u32 %v554, 16
      %v570 = vrot.slane %v568, 7
      %v571 = vshll.u32 %v554, 16
      %v573 = vor.u32 %v570, %v571
      %v574 = vsel %vm558, %v566, %v573
      %v575 = vrot.slane %v570, 4
      %v577 = vshll.u32 %v555, 16
      %v579 = vsel %vm558, %v575, %v577
      %583 = vst [vmem:[#allocation2] sm:$0xee] %v565
      %584 = vst [vmem:[#allocation2 + $0x18] sm:$0xff] %v574
      %585 = vst [vmem:[#allocation2 + $0x30] sm:$0x11] %v579
      %vm589 = vcmask 1043456
      %vm590 = vsmask.f32 7938
      %vm591 = vmand %vm589, %vm590
      %vm592 = vcmask 1047556
      %vm593 = vsmask.f32 7954
      %vm594 = vmand %vm592, %vm593
      %vm595 = vmor %vm594, %vm591
      %v596 = vld [vmem:[#allocation2 + $0x8] sm:$0xff]
      %v597 = vsel %vm595, %v553, %v596
      %598 = vst [vmem:[#allocation2 + $0x8] sm:$0xff] %v597
      %599 = vst [vmem:[#allocation2 + $0x20] sm:$0xff] %v554
      %vm600 = vcmask 1040384
      %vm601 = vmand %vm600, %vm556
      %vm602 = vcmask 1044484
      %vm603 = vsmask.f32 4352
      %vm604 = vmand %vm602, %vm603
      %vm605 = vmor %vm604, %vm601
      %v606 = vld [vmem:[#allocation2 + $0x38] sm:$0x11]
      %v607 = vsel %vm605, %v555, %v606
      %608 = vst [vmem:[#allocation2 + $0x38] sm:$0x11] %v607
      %vm609 = vsmask.f32 3328
      %vm610 = vsmask.f32 7440
      %vm611 = vmor %vm609, %vm610
      %v612 = vrot.slane %v560, 4
      %v613 = vrot.slane %v563, 5
      %v614 = vor.u32 %v612, %v613
      %v615 = vrot.slane %v614, 4
      %v616 = vrot.slane %v571, 5
      %v617 = vsel %vm611, %v615, %v616
      %v618 = vrot.slane %v568, 4
      %v619 = vor.u32 %v618, %v616
      %v620 = vrot.slane %v619, 4
      %v621 = vrot.slane %v577, 5
      %v622 = vsel %vm611, %v620, %v621
      %625 = vst [vmem:[#allocation2 + $0x10] sm:$0xff] %v617
      %626 = vst [vmem:[#allocation2 + $0x28] sm:$0xff] %v622
      %v627 = vld [vmem:[#allocation2] sm:$0xff]
      %v628 = vld [vmem:[#allocation2 + $0x8] sm:$0xff]
      %v629 = vld [vmem:[#allocation2 + $0x10] sm:$0xff]
      %v630 = vld [vmem:[#allocation2 + $0x18] sm:$0xff]
      %v631 = vld [vmem:[#allocation2 + $0x20] sm:$0xff]
      %v632 = vld [vmem:[#allocation2 + $0x28] sm:$0xff]
      %v633 = vld [vmem:[#allocation2 + $0x30] sm:$0x11]
      %v634 = vld [vmem:[#allocation2 + $0x38] sm:$0x11]
      %v635 = vld [vmem:[#allocation2 + $0x40] sm:$0x11]
      %v636 = vld [vmem:[%s3] sm:$0xf]
      %v637 = vld [vmem:[%s3 + $0x4] sm:$0xf]
      %v638 = vld [vmem:[%s3 + $0x8] sm:$0xf]
      %v639 = vld [vmem:[%s3 + $0xc] sm:$0xf]
      %v640 = vld [vmem:[%s3 + $0x10] sm:$0xf]
      %v641 = vld [vmem:[%s3 + $0x14] sm:$0xf]
      %v642 = vld [vmem:[%s3 + $0x18] sm:$0xf]
      %v643 = vld [vmem:[%s3 + $0x1c] sm:$0xf]
      %v644 = vld [vmem:[%s3 + $0x20] sm:$0xf]
      %v645 = vld [vmem:[%s3 + $0x24] sm:$0xf]
      %v646 = vld [vmem:[%s3 + $0x28] sm:$0xf]
      %v647 = vld [vmem:[%s3 + $0x2c] sm:$0xf]
      %v648 = vld [vmem:[%s3 + $0x30] sm:$0xf]
      %v649 = vld [vmem:[%s3 + $0x34] sm:$0xf]
      %v650 = vld [vmem:[%s3 + $0x38] sm:$0xf]
      %v651 = vld [vmem:[%s3 + $0x3c] sm:$0xf]
      %v652 = vld [vmem:[%s3 + $0x40] sm:$0xf]
      %v653 = vld [vmem:[%s3 + $0x44] sm:$0xf]
      %v654 = vld [vmem:[%s3 + $0x48] sm:$0xf]
      %v655 = vld [vmem:[%s3 + $0x4c] sm:$0xf]
      %v656 = vld [vmem:[%s3 + $0x50] sm:$0xf]
      %v657 = vld [vmem:[%s3 + $0x54] sm:$0xf]
      %v658 = vld [vmem:[%s3 + $0x58] sm:$0xf]
      %v659 = vld [vmem:[%s3 + $0x5c] sm:$0xf]
      %v660 = vld [vmem:[%s3 + $0x60] sm:$0xf]
      %v661 = vld [vmem:[%s3 + $0x64] sm:$0xf]
      %v662 = vld [vmem:[%s3 + $0x68] sm:$0xf]
      %v663 = vld [vmem:[%s3 + $0x6c] sm:$0xf]
      %v664 = vld [vmem:[%s3 + $0x70] sm:$0xf]
      %v665 = vld [vmem:[%s3 + $0x74] sm:$0xf]
      %v666 = vld [vmem:[%s3 + $0x78] sm:$0xf]
      %v667 = vld [vmem:[%s3 + $0x7c] sm:$0xf]
      %v668 = vld [vmem:[%s3 + $0x80] sm:$0xf]
      %v669 = vld [vmem:[%s3 + $0x84] sm:$0xf]
      %v670 = vld [vmem:[%s3 + $0x88] sm:$0xf]
      %v671 = vld [vmem:[%s3 + $0x8c] sm:$0xf]
      %v672 = vld [vmem:[%s3 + $0x90] sm:$0xf]
      %v673 = vld [vmem:[%s3 + $0x94] sm:$0xf]
      %v674 = vld [vmem:[%s3 + $0x98] sm:$0xf]
      %v675 = vld [vmem:[%s3 + $0x9c] sm:$0xf]
      %v676 = vld [vmem:[%s3 + $0xa0] sm:$0xf]
      %v677 = vld [vmem:[%s3 + $0xa4] sm:$0xf]
      %v678 = vld [vmem:[%s3 + $0xa8] sm:$0xf]
      %v679 = vld [vmem:[%s3 + $0xac] sm:$0xf]
      %v680 = vld [vmem:[%s3 + $0xb0] sm:$0xf]
      %v681 = vld [vmem:[%s3 + $0xb4] sm:$0xf]
      %v682 = vld [vmem:[%s3 + $0xb8] sm:$0xf]
      %v683 = vld [vmem:[%s3 + $0xbc] sm:$0xf]
      %v684 = vld [vmem:[%s3 + $0xc0] sm:$0xf]
      %v685 = vld [vmem:[%s3 + $0xc4] sm:$0xf]
      %v686 = vld [vmem:[%s3 + $0xc8] sm:$0xf]
      %v687 = vld [vmem:[%s3 + $0xcc] sm:$0xf]
      %v688 = vld [vmem:[%s3 + $0xd0] sm:$0xf]
      %v689 = vld [vmem:[%s3 + $0xd4] sm:$0xf]
      %v690 = vld [vmem:[%s3 + $0xd8] sm:$0xf]
      %v691 = vld [vmem:[%s3 + $0xdc] sm:$0xf]
      %v692 = vld [vmem:[%s3 + $0xe0] sm:$0xf]
      %v693 = vld [vmem:[%s3 + $0xe4] sm:$0xf]
      %v694 = vld [vmem:[%s3 + $0xe8] sm:$0xf]
      %v695 = vld [vmem:[%s3 + $0xec] sm:$0xf]
      %v696 = vld [vmem:[%s3 + $0xf0] sm:$0xf]
      %v697 = vld [vmem:[%s3 + $0xf4] sm:$0xf]
      %v698 = vld [vmem:[%s3 + $0xf8] sm:$0xf]
      %v699 = vld [vmem:[%s3 + $0xfc] sm:$0xf]
      %v700 = vld [vmem:[%s3 + $0x100] sm:$0xf]
      %v701 = vld [vmem:[%s3 + $0x104] sm:$0xf]
      %v702 = vld [vmem:[%s3 + $0x108] sm:$0xf]
      %v703 = vld [vmem:[%s3 + $0x10c] sm:$0xf]
      %v704 = vld [vmem:[%s3 + $0x110] sm:$0xf]
      %v705 = vld [vmem:[%s3 + $0x114] sm:$0xf]
      %v706 = vld [vmem:[%s3 + $0x118] sm:$0xf]
      %v707 = vld [vmem:[%s3 + $0x11c] sm:$0xf]
      %v708 = vld [vmem:[%s3 + $0x120] sm:$0xf]
      %v709 = vld [vmem:[%s3 + $0x124] sm:$0xf]
      %v710 = vld [vmem:[%s3 + $0x128] sm:$0xf]
      %v711 = vld [vmem:[%s3 + $0x12c] sm:$0xf]
      %v712 = vld [vmem:[%s3 + $0x130] sm:$0xf]
      %v713 = vld [vmem:[%s3 + $0x134] sm:$0xf]
      %v714 = vld [vmem:[%s3 + $0x138] sm:$0xf]
      %v715 = vld [vmem:[%s3 + $0x13c] sm:$0xf]
      %v716 = vld [vmem:[%s3 + $0x140] sm:$0xf]
      %v717 = vld [vmem:[%s3 + $0x144] sm:$0xf]
      %v718 = vld [vmem:[%s3 + $0x148] sm:$0xf]
      %v719 = vld [vmem:[%s3 + $0x14c] sm:$0xf]
      %v720 = vld [vmem:[%s3 + $0x150] sm:$0xf]
      %v721 = vld [vmem:[%s3 + $0x154] sm:$0xf]
      %v722 = vld [vmem:[%s3 + $0x158] sm:$0xf]
      %v723 = vld [vmem:[%s3 + $0x15c] sm:$0xf]
      %v724 = vld [vmem:[%s3 + $0x160] sm:$0xf]
      %v725 = vld [vmem:[%s3 + $0x164] sm:$0xf]
      %v726 = vld [vmem:[%s3 + $0x168] sm:$0xf]
      %v727 = vld [vmem:[%s3 + $0x16c] sm:$0xf]
      %v728 = vld [vmem:[%s3 + $0x170] sm:$0xf]
      %v729 = vld [vmem:[%s3 + $0x174] sm:$0xf]
      %v730 = vld [vmem:[%s3 + $0x178] sm:$0xf]
      %v731 = vld [vmem:[%s3 + $0x17c] sm:$0xf]
      %v732 = vld [vmem:[%s4] sm:$0x1]
      %v734 = vlaneseq
      %v735 = vshrl.u32 %v734, 7
      %v736 = vsub.s32 0, %v735
      %v737 = vrot.slane %v732, %v736
      %v748 = vunpack.c.l.b16 %v627
      %v749 = vunpack.c.h.b16 %v627
      %v750 = vunpack.c.l.b16 %v628
      %v751 = vunpack.c.h.b16 %v628
      %v752 = vunpack.c.l.b16 %v629
      %v753 = vunpack.c.h.b16 %v629
      %v754 = vunpack.c.l.b16 %v630
      %v755 = vunpack.c.h.b16 %v630
      %v756 = vunpack.c.l.b16 %v631
      %v757 = vunpack.c.h.b16 %v631
      %v758 = vunpack.c.l.b16 %v632
      %v759 = vunpack.c.h.b16 %v632
      %v760 = vunpack.c.l.b16 %v633
      %v761 = vunpack.c.h.b16 %v633
      %v762 = vunpack.c.l.b16 %v634
      %v763 = vunpack.c.h.b16 %v634
      %v764 = vunpack.c.l.b16 %v635
      %v765 = vunpack.c.h.b16 %v635
      %v766 = vpack.c.b16 %v754, %v748
      %v767 = vpack.c.b16 %v755, %v749
      %v768 = vpack.c.b16 %v756, %v750
      %v769 = vpack.c.b16 %v757, %v751
      %v770 = vpack.c.b16 %v758, %v752
      %v771 = vpack.c.b16 %v759, %v753
      %v772 = vpack.c.b16 %v760, %v760
      %v773 = vpack.c.b16 %v761, %v761
      %v774 = vpack.c.b16 %v762, %v762
      %v775 = vpack.c.b16 %v763, %v763
      %v776 = vpack.c.b16 %v764, %v764
      %v777 = vpack.c.b16 %v765, %v765
      %v886 = vunpack.c.l.b16 %v636
      %v887 = vunpack.c.l.b16 %v637
      %v888 = vunpack.c.l.b16 %v638
      %v889 = vunpack.c.l.b16 %v639
      %v890 = vunpack.c.l.b16 %v640
      %v891 = vunpack.c.l.b16 %v641
      %v892 = vunpack.c.l.b16 %v642
      %v893 = vunpack.c.l.b16 %v643
      %v894 = vunpack.c.l.b16 %v644
      %v895 = vunpack.c.l.b16 %v645
      %v896 = vunpack.c.l.b16 %v646
      %v897 = vunpack.c.l.b16 %v647
      %v898 = vunpack.c.l.b16 %v648
      %v899 = vunpack.c.l.b16 %v649
      %v900 = vunpack.c.l.b16 %v650
      %v901 = vunpack.c.l.b16 %v651
      %v902 = vunpack.c.l.b16 %v652
      %v903 = vunpack.c.l.b16 %v653
      %v904 = vunpack.c.l.b16 %v654
      %v905 = vunpack.c.l.b16 %v655
      %v906 = vunpack.c.l.b16 %v656
      %v907 = vunpack.c.l.b16 %v657
      %v908 = vunpack.c.l.b16 %v658
      %v909 = vunpack.c.l.b16 %v659
      %v910 = vunpack.c.l.b16 %v660
      %v911 = vunpack.c.l.b16 %v661
      %v912 = vunpack.c.l.b16 %v662
      %v913 = vunpack.c.l.b16 %v663
      %v914 = vunpack.c.l.b16 %v664
      %v915 = vunpack.c.l.b16 %v665
      %v916 = vunpack.c.l.b16 %v666
      %v917 = vunpack.c.l.b16 %v667
      %v918 = vunpack.c.l.b16 %v668
      %v919 = vunpack.c.l.b16 %v669
      %v920 = vunpack.c.l.b16 %v670
      %v921 = vunpack.c.l.b16 %v671
      %v922 = vunpack.c.l.b16 %v672
      %v923 = vunpack.c.l.b16 %v673
      %v924 = vunpack.c.l.b16 %v674
      %v925 = vunpack.c.l.b16 %v675
      %v926 = vunpack.c.l.b16 %v676
      %v927 = vunpack.c.l.b16 %v677
      %v928 = vunpack.c.l.b16 %v678
      %v929 = vunpack.c.l.b16 %v679
      %v930 = vunpack.c.l.b16 %v680
      %v931 = vunpack.c.l.b16 %v681
      %v932 = vunpack.c.l.b16 %v682
      %v933 = vunpack.c.l.b16 %v683
      %v934 = vunpack.c.l.b16 %v684
      %v935 = vunpack.c.l.b16 %v685
      %v936 = vunpack.c.l.b16 %v686
      %v937 = vunpack.c.l.b16 %v687
      %v938 = vunpack.c.l.b16 %v688
      %v939 = vunpack.c.l.b16 %v689
      %v940 = vunpack.c.l.b16 %v690
      %v941 = vunpack.c.l.b16 %v691
      %v942 = vunpack.c.l.b16 %v692
      %v943 = vunpack.c.l.b16 %v693
      %v944 = vunpack.c.l.b16 %v694
      %v945 = vunpack.c.l.b16 %v695
      %v946 = vunpack.c.l.b16 %v696
      %v947 = vunpack.c.l.b16 %v697
      %v948 = vunpack.c.l.b16 %v698
      %v949 = vunpack.c.l.b16 %v699
      %v950 = vunpack.c.l.b16 %v700
      %v951 = vunpack.c.l.b16 %v701
      %v952 = vunpack.c.l.b16 %v702
      %v953 = vunpack.c.l.b16 %v703
      %v954 = vunpack.c.l.b16 %v704
      %v955 = vunpack.c.l.b16 %v705
      %v956 = vunpack.c.l.b16 %v706
      %v957 = vunpack.c.l.b16 %v707
      %v958 = vunpack.c.l.b16 %v708
      %v959 = vunpack.c.l.b16 %v709
      %v960 = vunpack.c.l.b16 %v710
      %v961 = vunpack.c.l.b16 %v711
      %v962 = vunpack.c.l.b16 %v712
      %v963 = vunpack.c.l.b16 %v713
      %v964 = vunpack.c.l.b16 %v714
      %v965 = vunpack.c.l.b16 %v715
      %v966 = vunpack.c.l.b16 %v716
      %v967 = vunpack.c.l.b16 %v717
      %v968 = vunpack.c.l.b16 %v718
      %v969 = vunpack.c.l.b16 %v719
      %v970 = vunpack.c.l.b16 %v720
      %v971 = vunpack.c.l.b16 %v721
      %v972 = vunpack.c.l.b16 %v722
      %v973 = vunpack.c.l.b16 %v723
      %v974 = vunpack.c.l.b16 %v724
      %v975 = vunpack.c.l.b16 %v725
      %v976 = vunpack.c.l.b16 %v726
      %v977 = vunpack.c.l.b16 %v727
      %v978 = vunpack.c.l.b16 %v728
      %v979 = vunpack.c.l.b16 %v729
      %v980 = vunpack.c.l.b16 %v730
      %v981 = vunpack.c.l.b16 %v731
      %v982 = vpack.c.b16 %v887, %v886
      %v983 = vpack.c.b16 %v889, %v888
      %v984 = vpack.c.b16 %v891, %v890
      %v985 = vpack.c.b16 %v893, %v892
      %v986 = vpack.c.b16 %v895, %v894
      %v987 = vpack.c.b16 %v897, %v896
      %v988 = vpack.c.b16 %v899, %v898
      %v989 = vpack.c.b16 %v901, %v900
      %v990 = vpack.c.b16 %v903, %v902
      %v991 = vpack.c.b16 %v905, %v904
      %v992 = vpack.c.b16 %v907, %v906
      %v993 = vpack.c.b16 %v909, %v908
      %v994 = vpack.c.b16 %v911, %v910
      %v995 = vpack.c.b16 %v913, %v912
      %v996 = vpack.c.b16 %v915, %v914
      %v997 = vpack.c.b16 %v917, %v916
      %v998 = vpack.c.b16 %v919, %v918
      %v999 = vpack.c.b16 %v921, %v920
      %v1000 = vpack.c.b16 %v923, %v922
      %v1001 = vpack.c.b16 %v925, %v924
      %v1002 = vpack.c.b16 %v927, %v926
      %v1003 = vpack.c.b16 %v929, %v928
      %v1004 = vpack.c.b16 %v931, %v930
      %v1005 = vpack.c.b16 %v933, %v932
      %v1006 = vpack.c.b16 %v935, %v934
      %v1007 = vpack.c.b16 %v937, %v936
      %v1008 = vpack.c.b16 %v939, %v938
      %v1009 = vpack.c.b16 %v941, %v940
      %v1010 = vpack.c.b16 %v943, %v942
      %v1011 = vpack.c.b16 %v945, %v944
      %v1012 = vpack.c.b16 %v947, %v946
      %v1013 = vpack.c.b16 %v949, %v948
      %v1014 = vpack.c.b16 %v951, %v950
      %v1015 = vpack.c.b16 %v953, %v952
      %v1016 = vpack.c.b16 %v955, %v954
      %v1017 = vpack.c.b16 %v957, %v956
      %v1018 = vpack.c.b16 %v959, %v958
      %v1019 = vpack.c.b16 %v961, %v960
      %v1020 = vpack.c.b16 %v963, %v962
      %v1021 = vpack.c.b16 %v965, %v964
      %v1022 = vpack.c.b16 %v967, %v966
      %v1023 = vpack.c.b16 %v969, %v968
      %v1024 = vpack.c.b16 %v971, %v970
      %v1025 = vpack.c.b16 %v973, %v972
      %v1026 = vpack.c.b16 %v975, %v974
      %v1027 = vpack.c.b16 %v977, %v976
      %v1028 = vpack.c.b16 %v979, %v978
      %v1029 = vpack.c.b16 %v981, %v980
      %1078 = vmatprep.subr.bf16.mxu0 0
      %1079 = vmatpush1.bf16.msra.mxu0 %v982
      %1080 = vmatprep.subr.bf16.mxu0 0
      %1081 = vmatpush1.bf16.msra.mxu0 %v983
      %1082 = vmatprep.subr.bf16.mxu0 0
      %1083 = vmatpush1.bf16.msra.mxu0 %v984
      %1084 = vmatprep.subr.bf16.mxu0 0
      %1085 = vmatpush1.bf16.msra.mxu0 %v985
      %1086 = vmatprep.subr.bf16.mxu0 0
      %1087 = vmatpush1.bf16.msra.mxu0 %v986
      %1088 = vmatprep.subr.bf16.mxu0 0
      %1089 = vmatpush1.bf16.msra.mxu0 %v987
      %1090 = vmatprep.subr.bf16.mxu0 0
      %1091 = vmatpush1.bf16.msra.mxu0 %v988
      %1092 = vmatprep.subr.bf16.mxu0 0
      %1093 = vmatpush1.bf16.msra.mxu0 %v989
      %1094 = vmatprep.subr.bf16.mxu0 0
      %1095 = vmatpush1.bf16.msra.mxu0 %v990
      %1096 = vmatprep.subr.bf16.mxu0 0
      %1097 = vmatpush1.bf16.msra.mxu0 %v991
      %1098 = vmatprep.subr.bf16.mxu0 0
      %1099 = vmatpush1.bf16.msra.mxu0 %v992
      %1100 = vmatprep.subr.bf16.mxu0 0
      %1101 = vmatpush1.bf16.msra.mxu0 %v993
      %1102 = vmatprep.subr.bf16.mxu0 0
      %1103 = vmatpush1.bf16.msra.mxu0 %v994
      %1104 = vmatprep.subr.bf16.mxu0 0
      %1105 = vmatpush1.bf16.msra.mxu0 %v995
      %1106 = vmatprep.subr.bf16.mxu0 0
      %1107 = vmatpush1.bf16.msra.mxu0 %v996
      %1108 = vmatprep.subr.bf16.mxu0 0
      %1109 = vmatpush1.bf16.msra.mxu0 %v997
      %1110 = vmatprep.mubr.bf16.mxu0 %v767
      %1111 = vmatmul.mubr.bf16.gmra.mrb[0].mxu0 %v766
      %v1112 = vpop.f32.mrb[0].mxu0
      %v1113 = vadd.f32 %v737, %v1112
      %v1114 = vpop.f32.mrb[0].mxu0
      %v1115 = vpop.f32.mrb[0].mxu0
      %v1116 = vadd.f32 %v737, %v1115
      %v1117 = vpop.f32.mrb[0].mxu0
      %1118 = vmatprep.mubr.bf16.mxu0 %v773
      %1119 = vmatmul.mubr.bf16.gmra.mrb[0].mxu0 %v772
      %v1120 = vpop.f32.mrb[0].mxu0
      %v1121 = vadd.f32 %v737, %v1120
      %v1122 = vpop.f32.mrb[0].mxu0
      %v1123 = vpop.f32.mrb[0].mxu0
      %v1124 = vpop.f32.mrb[0].mxu0
      %1125 = vdwg.mxu0
      %1126 = vmatprep.subr.bf16.mxu0 0
      %1127 = vmatpush1.bf16.msra.mxu0 %v998
      %1128 = vmatprep.subr.bf16.mxu0 0
      %1129 = vmatpush1.bf16.msra.mxu0 %v999
      %1130 = vmatprep.subr.bf16.mxu0 0
      %1131 = vmatpush1.bf16.msra.mxu0 %v1000
      %1132 = vmatprep.subr.bf16.mxu0 0
      %1133 = vmatpush1.bf16.msra.mxu0 %v1001
      %1134 = vmatprep.subr.bf16.mxu0 0
      %1135 = vmatpush1.bf16.msra.mxu0 %v1002
      %1136 = vmatprep.subr.bf16.mxu0 0
      %1137 = vmatpush1.bf16.msra.mxu0 %v1003
      %1138 = vmatprep.subr.bf16.mxu0 0
      %1139 = vmatpush1.bf16.msra.mxu0 %v1004
      %1140 = vmatprep.subr.bf16.mxu0 0
      %1141 = vmatpush1.bf16.msra.mxu0 %v1005
      %1142 = vmatprep.subr.bf16.mxu0 0
      %1143 = vmatpush1.bf16.msra.mxu0 %v1006
      %1144 = vmatprep.subr.bf16.mxu0 0
      %1145 = vmatpush1.bf16.msra.mxu0 %v1007
      %1146 = vmatprep.subr.bf16.mxu0 0
      %1147 = vmatpush1.bf16.msra.mxu0 %v1008
      %1148 = vmatprep.subr.bf16.mxu0 0
      %1149 = vmatpush1.bf16.msra.mxu0 %v1009
      %1150 = vmatprep.subr.bf16.mxu0 0
      %1151 = vmatpush1.bf16.msra.mxu0 %v1010
      %1152 = vmatprep.subr.bf16.mxu0 0
      %1153 = vmatpush1.bf16.msra.mxu0 %v1011
      %1154 = vmatprep.subr.bf16.mxu0 0
      %1155 = vmatpush1.bf16.msra.mxu0 %v1012
      %1156 = vmatprep.subr.bf16.mxu0 0
      %1157 = vmatpush1.bf16.msra.mxu0 %v1013
      %1158 = vmatprep.mubr.bf16.mxu0 %v769
      %1159 = vmatmul.mubr.bf16.gmra.mrb[0].mxu0 %v768
      %v1160 = vpop.f32.mrb[0].mxu0
      %v1161 = vadd.f32 %v1113, %v1160
      %v1162 = vpop.f32.mrb[0].mxu0
      %v1163 = vpop.f32.mrb[0].mxu0
      %v1164 = vadd.f32 %v1116, %v1163
      %v1165 = vpop.f32.mrb[0].mxu0
      %1166 = vmatprep.mubr.bf16.mxu0 %v775
      %1167 = vmatmul.mubr.bf16.gmra.mrb[0].mxu0 %v774
      %v1168 = vpop.f32.mrb[0].mxu0
      %v1169 = vadd.f32 %v1121, %v1168
      %v1170 = vpop.f32.mrb[0].mxu0
      %v1171 = vpop.f32.mrb[0].mxu0
      %v1172 = vpop.f32.mrb[0].mxu0
      %1173 = vdwg.mxu0
      %1174 = vmatprep.subr.bf16.mxu0 0
      %1175 = vmatpush1.bf16.msra.mxu0 %v1014
      %1176 = vmatprep.subr.bf16.mxu0 0
      %1177 = vmatpush1.bf16.msra.mxu0 %v1015
      %1178 = vmatprep.subr.bf16.mxu0 0
      %1179 = vmatpush1.bf16.msra.mxu0 %v1016
      %1180 = vmatprep.subr.bf16.mxu0 0
      %1181 = vmatpush1.bf16.msra.mxu0 %v1017
      %1182 = vmatprep.subr.bf16.mxu0 0
      %1183 = vmatpush1.bf16.msra.mxu0 %v1018
      %1184 = vmatprep.subr.bf16.mxu0 0
      %1185 = vmatpush1.bf16.msra.mxu0 %v1019
      %1186 = vmatprep.subr.bf16.mxu0 0
      %1187 = vmatpush1.bf16.msra.mxu0 %v1020
      %1188 = vmatprep.subr.bf16.mxu0 0
      %1189 = vmatpush1.bf16.msra.mxu0 %v1021
      %1190 = vmatprep.subr.bf16.mxu0 0
      %1191 = vmatpush1.bf16.msra.mxu0 %v1022
      %1192 = vmatprep.subr.bf16.mxu0 0
      %1193 = vmatpush1.bf16.msra.mxu0 %v1023
      %1194 = vmatprep.subr.bf16.mxu0 0
      %1195 = vmatpush1.bf16.msra.mxu0 %v1024
      %1196 = vmatprep.subr.bf16.mxu0 0
      %1197 = vmatpush1.bf16.msra.mxu0 %v1025
      %1198 = vmatprep.subr.bf16.mxu0 0
      %1199 = vmatpush1.bf16.msra.mxu0 %v1026
      %1200 = vmatprep.subr.bf16.mxu0 0
      %1201 = vmatpush1.bf16.msra.mxu0 %v1027
      %1202 = vmatprep.subr.bf16.mxu0 0
      %1203 = vmatpush1.bf16.msra.mxu0 %v1028
      %1204 = vmatprep.subr.bf16.mxu0 0
      %1205 = vmatpush1.bf16.msra.mxu0 %v1029
      %1206 = vmatprep.mubr.bf16.mxu0 %v771
      %1207 = vmatmul.mubr.bf16.gmra.mrb[0].mxu0 %v770
      %v1208 = vpop.f32.mrb[0].mxu0
      %v1209 = vadd.f32 %v1161, %v1208
      %v1210 = vpop.f32.mrb[0].mxu0
      %v1211 = vpop.f32.mrb[0].mxu0
      %v1212 = vadd.f32 %v1164, %v1211
      %v1213 = vpop.f32.mrb[0].mxu0
      %1214 = vmatprep.mubr.bf16.mxu0 %v777
      %1215 = vmatmul.mubr.bf16.gmra.mrb[0].mxu0 %v776
      %v1216 = vpop.f32.mrb[0].mxu0
      %v1217 = vadd.f32 %v1169, %v1216
      %v1218 = vpop.f32.mrb[0].mxu0
      %v1219 = vpop.f32.mrb[0].mxu0
      %v1220 = vpop.f32.mrb[0].mxu0
      %1221 = vdwg.mxu0
      %vm1222 = vcmp.ge.f32.partialorder %v1209, 0.0
      %vm1223 = vcmp.ge.f32.partialorder %v1212, 0.0
      %vm1224 = vcmp.ge.f32.partialorder %v1217, 0.0
      %v1225 = vmul.f32 %v1209, 0.2
      %v1226 = vmul.f32 %v1212, 0.2
      %v1227 = vmul.f32 %v1217, 0.2
      %v1228 = vsel %vm1222, %v1209, %v1225
      %v1229 = vsel %vm1223, %v1212, %v1226
      %v1230 = vsel %vm1224, %v1217, %v1227
      %1234 = vrot.lane.b32.xlu0 %v283, 64
      %v1235 = vpop.permute.xlu0 %1234
      %1236 = vrot.lane.b32.xlu0 %v284, 64
      %v1237 = vpop.permute.xlu0 %1236
      %1238 = vrot.lane.b32.xlu0 %v285, 64
      %v1239 = vpop.permute.xlu0 %1238
      %v1243 = vsub.f32 %v1228, %v1235
      %v1244 = vsub.f32 %v1229, %v1237
      %v1245 = vsub.f32 %v1230, %v1239
      %vm1246 = vcmask 1040384
      %vm1247 = vcmask 520196
      %vm1248 = vmor %vm1247, %vm1246
      %1249 = vst.msk [vmem:[#allocation3] sm:$0x11] %vm1248, 0
      %1250 = vst.msk [vmem:[#allocation3 + $0x10] sm:$0x11] %vm1248, 0
      %v1251 = vpack.c.bf16 %v1244, %v1243
      %v1252 = vpack.c.bf16 %v1245, %v1245
      %v1255 = vunpack.c.l.b16 %v1251
      %v1256 = vunpack.c.h.b16 %v1251
      %v1257 = vunpack.c.l.b16 %v1252
      %v1258 = vpack.c.b16 %v1255, %v1255
      %v1259 = vpack.c.b16 %v1256, %v1256
      %v1260 = vpack.c.b16 %v1257, %v1257
      %v1262 = vshrl.u32 %v1258, 16
      %v1264 = vrot.slane %v1262, 7
      %v1265 = vshll.u32 %v1258, 16
      %v1267 = vor.u32 %v1264, %v1265
      %v1268 = vrot.slane %v1264, 4
      %v1270 = vshrl.u32 %v1259, 16
      %v1272 = vrot.slane %v1270, 7
      %v1273 = vshll.u32 %v1259, 16
      %v1275 = vor.u32 %v1272, %v1273
      %v1276 = vsel %vm558, %v1268, %v1275
      %v1277 = vrot.slane %v1272, 4
      %v1279 = vshll.u32 %v1260, 16
      %v1281 = vsel %vm558, %v1277, %v1279
      %vm1285 = vcmask 519169
      %1286 = vst.msk [vmem:[#allocation3] sm:$0xe] %vm1285, %v1267
      %vm1287 = vcmask 519168
      %1288 = vst.msk [vmem:[#allocation3 + $0x8] sm:$0xf] %vm1287, %v1276
      %vm1289 = vcmask 516096
      %1290 = vst.msk [vmem:[#allocation3 + $0x10] sm:$0x1] %vm1289, %v1281
      %1291 = vrot.lane.b32.xlu0 %v1258, 64
      %v1292 = vpop.permute.xlu0 %1291
      %1293 = vrot.lane.b32.xlu0 %v1259, 64
      %v1294 = vpop.permute.xlu0 %1293
      %1295 = vrot.lane.b32.xlu0 %v1260, 64
      %v1296 = vpop.permute.xlu0 %1295
      %vm1300 = vcmask 1043968
      %vm1301 = vmand %vm1300, %vm590
      %v1302 = vld [vmem:[#allocation3] sm:$0xf]
      %v1303 = vsel %vm1301, %v1292, %v1302
      %1304 = vst [vmem:[#allocation3] sm:$0xf] %v1303
      %vm1305 = vcmask 1043968
      %1306 = vst.msk [vmem:[#allocation3 + $0x8] sm:$0xf] %vm1305, %v1294
      %vm1307 = vcmask 1040896
      %vm1308 = vmand %vm1307, %vm556
      %v1309 = vld [vmem:[#allocation3 + $0x10] sm:$0x1]
      %v1310 = vsel %vm1308, %v1296, %v1309
      %1311 = vst [vmem:[#allocation3 + $0x10] sm:$0x1] %v1310
      %v1312 = vrot.slane %v1262, 4
      %v1313 = vrot.slane %v1265, 5
      %v1314 = vor.u32 %v1312, %v1313
      %v1315 = vrot.slane %v1314, 4
      %v1316 = vrot.slane %v1273, 5
      %v1317 = vsel %vm611, %v1315, %v1316
      %v1318 = vrot.slane %v1270, 4
      %v1319 = vor.u32 %v1318, %v1316
      %v1320 = vrot.slane %v1319, 4
      %v1321 = vrot.slane %v1279, 5
      %v1322 = vsel %vm611, %v1320, %v1321
      %1325 = vst.msk [vmem:[#allocation3 + $0x4] sm:$0xf] %vm1287, %v1317
      %1326 = vst.msk [vmem:[#allocation3 + $0xc] sm:$0xf] %vm1287, %v1322
      %v1327 = vld [vmem:[#allocation3] sm:$0xff]
      %v1328 = vld [vmem:[#allocation3 + $0x8] sm:$0xff]
      %v1329 = vld [vmem:[#allocation3 + $0x10] sm:$0x11]
      %v1330 = vld [vmem:[%s5] sm:$0xff]
      %v1331 = vld [vmem:[%s5 + $0x8] sm:$0xff]
      %v1332 = vld [vmem:[%s5 + $0x10] sm:$0xff]
      %v1333 = vld [vmem:[%s5 + $0x18] sm:$0xff]
      %v1334 = vld [vmem:[%s5 + $0x20] sm:$0xff]
      %v1335 = vld [vmem:[%s5 + $0x28] sm:$0xff]
      %v1336 = vld [vmem:[%s5 + $0x30] sm:$0xff]
      %v1337 = vld [vmem:[%s5 + $0x38] sm:$0xff]
      %v1338 = vld [vmem:[%s5 + $0x40] sm:$0xff]
      %v1339 = vld [vmem:[%s5 + $0x48] sm:$0xff]
      %v1340 = vld [vmem:[%s5 + $0x50] sm:$0xff]
      %v1341 = vld [vmem:[%s5 + $0x58] sm:$0xff]
      %v1342 = vld [vmem:[%s5 + $0x60] sm:$0xff]
      %v1343 = vld [vmem:[%s5 + $0x68] sm:$0xff]
      %v1344 = vld [vmem:[%s5 + $0x70] sm:$0xff]
      %v1345 = vld [vmem:[%s5 + $0x78] sm:$0xff]
      %v1346 = vld [vmem:[%s5 + $0x80] sm:$0xff]
      %v1347 = vld [vmem:[%s5 + $0x88] sm:$0xff]
      %v1348 = vld [vmem:[%s5 + $0x90] sm:$0xff]
      %v1349 = vld [vmem:[%s5 + $0x98] sm:$0xff]
      %v1350 = vld [vmem:[%s5 + $0xa0] sm:$0xff]
      %v1351 = vld [vmem:[%s5 + $0xa8] sm:$0xff]
      %v1352 = vld [vmem:[%s5 + $0xb0] sm:$0xff]
      %v1353 = vld [vmem:[%s5 + $0xb8] sm:$0xff]
      %v1354 = vld [vmem:[%s6] sm:$0x3]
      %v1356 = vlaneseq
      %v1357 = vshrl.u32 %v1356, 7
      %v1358 = vsub.s32 0, %v1357
      %v1359 = vrot.slane %v1354, %v1358
      %v1360 = vlaneseq
      %v1361 = vshrl.u32 %v1360, 7
      %v1362 = vsub.s32 1, %v1361
      %v1363 = vrot.slane %v1354, %v1362
      %v1369 = vunpack.c.l.b16 %v1327
      %v1370 = vunpack.c.h.b16 %v1327
      %v1371 = vunpack.c.l.b16 %v1328
      %v1372 = vunpack.c.h.b16 %v1328
      %v1373 = vunpack.c.l.b16 %v1329
      %v1374 = vunpack.c.h.b16 %v1329
      %v1375 = vpack.c.b16 %v1371, %v1369
      %v1376 = vpack.c.b16 %v1372, %v1370
      %v1377 = vpack.c.b16 %v1373, %v1373
      %v1378 = vpack.c.b16 %v1374, %v1374
      %v1405 = vunpack.c.l.b16 %v1330
      %v1406 = vunpack.c.h.b16 %v1330
      %v1407 = vunpack.c.l.b16 %v1331
      %v1408 = vunpack.c.h.b16 %v1331
      %v1409 = vunpack.c.l.b16 %v1332
      %v1410 = vunpack.c.h.b16 %v1332
      %v1411 = vunpack.c.l.b16 %v1333
      %v1412 = vunpack.c.h.b16 %v1333
      %v1413 = vunpack.c.l.b16 %v1334
      %v1414 = vunpack.c.h.b16 %v1334
      %v1415 = vunpack.c.l.b16 %v1335
      %v1416 = vunpack.c.h.b16 %v1335
      %v1417 = vunpack.c.l.b16 %v1336
      %v1418 = vunpack.c.h.b16 %v1336
      %v1419 = vunpack.c.l.b16 %v1337
      %v1420 = vunpack.c.h.b16 %v1337
      %v1421 = vunpack.c.l.b16 %v1338
      %v1422 = vunpack.c.h.b16 %v1338
      %v1423 = vunpack.c.l.b16 %v1339
      %v1424 = vunpack.c.h.b16 %v1339
      %v1425 = vunpack.c.l.b16 %v1340
      %v1426 = vunpack.c.h.b16 %v1340
      %v1427 = vunpack.c.l.b16 %v1341
      %v1428 = vunpack.c.h.b16 %v1341
      %v1429 = vunpack.c.l.b16 %v1342
      %v1430 = vunpack.c.h.b16 %v1342
      %v1431 = vunpack.c.l.b16 %v1343
      %v1432 = vunpack.c.h.b16 %v1343
      %v1433 = vunpack.c.l.b16 %v1344
      %v1434 = vunpack.c.h.b16 %v1344
      %v1435 = vunpack.c.l.b16 %v1345
      %v1436 = vunpack.c.h.b16 %v1345
      %v1437 = vunpack.c.l.b16 %v1346
      %v1438 = vunpack.c.h.b16 %v1346
      %v1439 = vunpack.c.l.b16 %v1347
      %v1440 = vunpack.c.h.b16 %v1347
      %v1441 = vunpack.c.l.b16 %v1348
      %v1442 = vunpack.c.h.b16 %v1348
      %v1443 = vunpack.c.l.b16 %v1349
      %v1444 = vunpack.c.h.b16 %v1349
      %v1445 = vunpack.c.l.b16 %v1350
      %v1446 = vunpack.c.h.b16 %v1350
      %v1447 = vunpack.c.l.b16 %v1351
      %v1448 = vunpack.c.h.b16 %v1351
      %v1449 = vunpack.c.l.b16 %v1352
      %v1450 = vunpack.c.h.b16 %v1352
      %v1451 = vunpack.c.l.b16 %v1353
      %v1452 = vunpack.c.h.b16 %v1353
      %v1453 = vpack.c.b16 %v1407, %v1405
      %v1454 = vpack.c.b16 %v1408, %v1406
      %v1455 = vpack.c.b16 %v1411, %v1409
      %v1456 = vpack.c.b16 %v1412, %v1410
      %v1457 = vpack.c.b16 %v1415, %v1413
      %v1458 = vpack.c.b16 %v1416, %v1414
      %v1459 = vpack.c.b16 %v1419, %v1417
      %v1460 = vpack.c.b16 %v1420, %v1418
      %v1461 = vpack.c.b16 %v1423, %v1421
      %v1462 = vpack.c.b16 %v1424, %v1422
      %v1463 = vpack.c.b16 %v1427, %v1425
      %v1464 = vpack.c.b16 %v1428, %v1426
      %v1465 = vpack.c.b16 %v1431, %v1429
      %v1466 = vpack.c.b16 %v1432, %v1430
      %v1467 = vpack.c.b16 %v1435, %v1433
      %v1468 = vpack.c.b16 %v1436, %v1434
      %v1469 = vpack.c.b16 %v1439, %v1437
      %v1470 = vpack.c.b16 %v1440, %v1438
      %v1471 = vpack.c.b16 %v1443, %v1441
      %v1472 = vpack.c.b16 %v1444, %v1442
      %v1473 = vpack.c.b16 %v1447, %v1445
      %v1474 = vpack.c.b16 %v1448, %v1446
      %v1475 = vpack.c.b16 %v1451, %v1449
      %v1476 = vpack.c.b16 %v1452, %v1450
      %v1502 = vsel %vm457, %v1376, 0
      %v1505 = vsel %vm457, %v1378, 0
      %1507 = vmatprep.subr.bf16.mxu0 %v1454
      %1508 = vmatpush1.bf16.msra.mxu0 %v1453
      %1509 = vmatprep.subr.bf16.mxu0 %v1456
      %1510 = vmatpush1.bf16.msra.mxu0 %v1455
      %1511 = vmatprep.subr.bf16.mxu0 %v1458
      %1512 = vmatpush1.bf16.msra.mxu0 %v1457
      %1513 = vmatprep.subr.bf16.mxu0 %v1460
      %1514 = vmatpush1.bf16.msra.mxu0 %v1459
      %1515 = vmatprep.subr.bf16.mxu0 %v1462
      %1516 = vmatpush1.bf16.msra.mxu0 %v1461
      %1517 = vmatprep.subr.bf16.mxu0 %v1464
      %1518 = vmatpush1.bf16.msra.mxu0 %v1463
      %1519 = vmatprep.subr.bf16.mxu0 %v1466
      %1520 = vmatpush1.bf16.msra.mxu0 %v1465
      %1521 = vmatprep.subr.bf16.mxu0 %v1468
      %1522 = vmatpush1.bf16.msra.mxu0 %v1467
      %1523 = vmatprep.subr.bf16.mxu0 %v1470
      %1524 = vmatpush1.bf16.msra.mxu0 %v1469
      %1525 = vmatprep.subr.bf16.mxu0 %v1472
      %1526 = vmatpush1.bf16.msra.mxu0 %v1471
      %1527 = vmatprep.subr.bf16.mxu0 %v1474
      %1528 = vmatpush1.bf16.msra.mxu0 %v1473
      %1529 = vmatprep.subr.bf16.mxu0 %v1476
      %1530 = vmatpush1.bf16.msra.mxu0 %v1475
      %1531 = vmatprep.subr.bf16.mxu0 0
      %1532 = vmatpush1.bf16.msra.mxu0 0
      %1533 = vmatprep.subr.bf16.mxu0 0
      %1534 = vmatpush1.bf16.msra.mxu0 0
      %1535 = vmatprep.subr.bf16.mxu0 0
      %1536 = vmatpush1.bf16.msra.mxu0 0
      %1537 = vmatprep.subr.bf16.mxu0 0
      %1538 = vmatpush1.bf16.msra.mxu0 0
      %1539 = vmatprep.mubr.bf16.mxu0 %v1502
      %1540 = vmatmul.mubr.bf16.gmra.mrb[0].mxu0 %v1375
      %v1541 = vpop.f32.mrb[0].mxu0
      %v1542 = vadd.f32 %v1359, %v1541
      %v1543 = vpop.f32.mrb[0].mxu0
      %v1544 = vadd.f32 %v1363, %v1543
      %v1545 = vpop.f32.mrb[0].mxu0
      %v1546 = vadd.f32 %v1359, %v1545
      %v1547 = vpop.f32.mrb[0].mxu0
      %v1548 = vadd.f32 %v1363, %v1547
      %1549 = vmatprep.mubr.bf16.mxu0 %v1505
      %1550 = vmatmul.mubr.bf16.gmra.mrb[0].mxu0 %v1377
      %v1551 = vpop.f32.mrb[0].mxu0
      %v1552 = vadd.f32 %v1359, %v1551
      %v1553 = vpop.f32.mrb[0].mxu0
      %v1554 = vadd.f32 %v1363, %v1553
      %v1555 = vpop.f32.mrb[0].mxu0
      %v1556 = vpop.f32.mrb[0].mxu0
      %1557 = vdwg.mxu0
      %vm1558 = vcmp.ge.f32.partialorder %v1542, 0.0
      %vm1559 = vcmp.ge.f32.partialorder %v1544, 0.0
      %vm1560 = vcmp.ge.f32.partialorder %v1546, 0.0
      %vm1561 = vcmp.ge.f32.partialorder %v1548, 0.0
      %vm1562 = vcmp.ge.f32.partialorder %v1552, 0.0
      %vm1563 = vcmp.ge.f32.partialorder %v1554, 0.0
      %v1564 = vmul.f32 %v1542, 0.2
      %v1565 = vmul.f32 %v1544, 0.2
      %v1566 = vmul.f32 %v1546, 0.2
      %v1567 = vmul.f32 %v1548, 0.2
      %v1568 = vmul.f32 %v1552, 0.2
      %v1569 = vmul.f32 %v1554, 0.2
      %v1570 = vsel %vm1558, %v1542, %v1564
      %v1571 = vsel %vm1559, %v1544, %v1565
      %v1572 = vsel %vm1560, %v1546, %v1566
      %v1573 = vsel %vm1561, %v1548, %v1567
      %v1574 = vsel %vm1562, %v1552, %v1568
      %v1575 = vsel %vm1563, %v1554, %v1569
      %v1576 = vadd.f32 %v1570, %v527
      %v1577 = vadd.f32 %v1571, %v528
      %v1578 = vadd.f32 %v1572, %v529
      %v1579 = vadd.f32 %v1573, %v530
      %v1580 = vadd.f32 %v1574, %v531
      %v1581 = vadd.f32 %v1575, %v532
      %vm1588 = vcmask 1046528
      %v1589 = vrot.slane %v1576, 1
      %v1590 = vrot.slane %v1578, 1
      %v1591 = vsel %vm1588, %v1589, %v1590
      %v1592 = vrot.slane %v1577, 1
      %v1593 = vrot.slane %v1579, 1
      %v1594 = vsel %vm1588, %v1592, %v1593
      %v1595 = vrot.slane %v1580, 1
      %v1596 = vsel %vm1588, %v1590, %v1595
      %v1597 = vrot.slane %v1581, 1
      %v1598 = vsel %vm1588, %v1593, %v1597
      %1603 = vst [vmem:[%s278] sm:$0xff] %v1591
      %1604 = vst [vmem:[%s278 + $0x8] sm:$0xff] %v1594
      %1605 = vst [vmem:[%s278 + $0x10] sm:$0xff] %v1596
      %1606 = vst [vmem:[%s278 + $0x18] sm:$0xff] %v1598
      %p1607 = scmp.lt.s32.totalorder %s18, 1
      %s1608 = scalar_select %p1607, %s18, 1
      %s1609 = smul.addr %s1608, 4
      %s1610 = smul.addr %s1609, 8
      %s1611 = scalar_lea.vmem %s7, %s1610
      // Predicated region
      $region49: #{up_projection_block.1} parent=47 // pred_check
        %p1612 = pneg %p188
      $region50: #{up_projection_block.1} parent=47 // pred_check_branch
        %1614 = sbr.rel (%p1612) target = $region52
      $region51: #{up_projection_block.1} parent=47 // pred_region
        _
      $region52: #{up_projection_block.1} parent=47 // pred_fallthru
        _
    $region48: #{up_projection_block.1} parent=5 // pred_fallthru
      _
    %p1615 = scmp.le.s32.totalorder 2, %s13
    // Predicated region
    $region53: #{up_projection_block.1} parent=5 // pred_check
      %p1616 = pneg %p1615
    $region54: #{up_projection_block.1} parent=5 // pred_check_branch
      %1618 = sbr.rel (%p1616) target = $region56
    $region55: #{up_projection_block.1} parent=5 // pred_region
      %s1619 = ssub.s32 %s13, 2
      // Predicated region
      $region57: #{up_projection_block.1} parent=55 // pred_check
        %p1620 = pneg %p194
      $region58: #{up_projection_block.1} parent=55 // pred_check_branch
        %1622 = sbr.rel (%p1620) target = $region60
      $region59: #{up_projection_block.1} parent=55 // pred_region
        %p1623 = scmp.lt.s32.totalorder %s19, 1
        %s1624 = scalar_select %p1623, %s19, 1
        %s1625 = smul.addr %s1624, 4
        %s1626 = smul.addr %s1625, 8
        %s1627 = scalar_lea.vmem %s7, %s1626
      $region60: #{up_projection_block.1} parent=55 // pred_fallthru
        _
    $region56: #{up_projection_block.1} parent=5 // pred_fallthru
      _
  $region6: #{up_projection_block.1} parent=0 // loop_footer
    %s17 = sadd.s32 1, %s13
  $region7: #{up_projection_block.1} parent=0 // loop_footer_branch
    %12 = sbr.rel target = $region3
  $region8: #{up_projection_block.1} parent=0 // loop_exit
    _

</llo_original>
